<compile_context>
chip_gen: v7x
topology: tpu7x:2x2x1
jax: 0.10.0
libtpu: 0.0.40
codegen_flags: <defaults>
</compile_context>

<pallas_src>
import functools
import math

import jax
import jax.numpy as jnp
from jax.experimental import pallas as pl
from jax.experimental.pallas import tpu as pltpu

NPAD = 128  # fc3 output padded from 10 -> 128 lanes (lane-dense output slab)


def _round_up(x, m):
    return ((x + m - 1) // m) * m


def _mlp_kernel(x_ref, w1_ref, b1_ref, w2_ref, b2_ref, w3_ref, b3_ref, o_ref,
                *, bf16_clip):
    # relu(z) then clamp(-1, 1) == clip(z, 0, 1); dropout is eval-mode identity.
    def act(z):
        if bf16_clip:   # v6e/v7x: bf16 VALU path (bounds 0/1 exact in bf16)
            return jnp.clip(z.astype(jnp.bfloat16), 0.0, 1.0)
        return jnp.clip(z, 0.0, 1.0).astype(jnp.bfloat16)   # v5e: f32 VPU only

    x = x_ref[...]                                                 # (TB, 1024) bf16

    # fc1 / fc2: bf16 MXU inputs, f32 accumulation, fused clip + downcast.
    h1 = act(jnp.dot(x, w1_ref[...], preferred_element_type=jnp.float32)
             + b1_ref[...])                                        # (TB, 512) bf16
    h2 = act(jnp.dot(h1, w2_ref[...], preferred_element_type=jnp.float32)
             + b2_ref[...])                                        # (TB, 256) bf16

    # fc3 (padded to 128 lanes, padded bias = -1e30) + log_softmax, all in f32.
    logits = jnp.dot(h2, w3_ref[...],
                     preferred_element_type=jnp.float32) + b3_ref[...]
    m = jnp.max(logits, axis=-1, keepdims=True)                    # pad lanes never win
    shifted = logits - m
    lse = jnp.log(jnp.sum(jnp.exp(shifted), axis=-1, keepdims=True))  # exp(-1e30-m)==0
    o_ref[...] = shifted - lse                                     # (TB, 128) f32


def _tile_config():
    """Generation-aware (base batch tile, dual-TensorCore?, bf16 VPU?)."""
    try:
        kind = jax.devices()[0].device_kind.lower()
    except Exception:
        kind = ""
    is_v5e = ("v5 lite" in kind) or ("v5e" in kind) or ("v5litepod" in kind)
    is_v4 = "v4" in kind
    dual_tc = "v7" in kind                 # v7x: 2 TensorCores per chip
    base_tb = 128 if is_v5e else 256       # v5e MXU is 128-wide: no gain past 128
    bf16_vpu = not (is_v5e or is_v4)       # v6e/v7x have bf16 VALU paths
    return base_tb, dual_tc, bf16_vpu


def prepare_params(params):
    """One-time parameter prep, hoisted out of the per-call path:
    bf16 matmul weights; fc3 padded to a lane-dense 128-wide output
    (padded bias = -1e30 so max/logsumexp are unaffected)."""
    w1, b1, w2, b2, w3, b3 = params
    w3p = jnp.zeros((256, NPAD), jnp.bfloat16).at[:, :10].set(w3.astype(jnp.bfloat16))
    b3p = jnp.full((1, NPAD), -1e30, jnp.float32).at[:, :10].set(b3.astype(jnp.float32))
    return (w1.astype(jnp.bfloat16), b1.astype(jnp.float32),
            w2.astype(jnp.bfloat16), b2.astype(jnp.float32),
            w3p, b3p)


def net_forward(x, prep_params, *, tb=None):
    """x: (B, 1, 32, 32) / (B, 32, 32) / (B, 1024) float; params from prepare_params."""
    w1b, b1, w2b, b2, w3p, b3p = prep_params
    B = x.shape[0]
    base_tb, dual_tc, bf16_vpu = _tile_config()
    if tb is None:
        tb = base_tb

    # Batch tile: multiple of 16 (bf16 sublane packing); on dual-TC parts keep
    # TB <= half the padded batch so the "parallel" axis has >= 2 grid steps.
    TB = min(tb, _round_up(B, 16))
    if dual_tc and B >= 32:
        TB = min(TB, _round_up((B + 1) // 2, 16))
    TB = max(16, (TB // 16) * 16)
    Bp = _round_up(B, TB)

    xb = x.reshape(B, 32 * 32).astype(jnp.bfloat16)   # single cast, no f32 intermediate
    if Bp != B:
        xb = jnp.pad(xb, ((0, Bp - B), (0, 0)))

    resident = dict(pipeline_mode=pl.Buffered(1))     # constant block, never re-fetched

    out = pl.pallas_call(
        functools.partial(_mlp_kernel, bf16_clip=bf16_vpu),
        out_shape=jax.ShapeDtypeStruct((Bp, NPAD), jnp.float32),
        grid=(Bp // TB,),
        in_specs=[
            pl.BlockSpec((TB, 1024), lambda i: (i, 0)),            # pipelined activations
            pl.BlockSpec((1024, 512), lambda i: (0, 0), **resident),
            pl.BlockSpec((1, 512), lambda i: (0, 0), **resident),
            pl.BlockSpec((512, 256), lambda i: (0, 0), **resident),
            pl.BlockSpec((1, 256), lambda i: (0, 0), **resident),
            pl.BlockSpec((256, NPAD), lambda i: (0, 0), **resident),
            pl.BlockSpec((1, NPAD), lambda i: (0, 0), **resident),
        ],
        out_specs=pl.BlockSpec((TB, NPAD), lambda i: (i, 0)),
        compiler_params=pltpu.CompilerParams(
            dimension_semantics=("parallel",),        # batch sharding on v7x megacore
            vmem_limit_bytes=(32 << 20) if TB > 256 else (16 << 20),
        ),
    )(xb, w1b, b1, w2b, b2, w3p, b3p)

    return out[:B, :10]                               # drop batch pad + class pad


def init_params(key):
    """Deterministic init matching nn.Linear shapes (uniform +-1/sqrt(fan_in))."""
    def linear(key, fan_in, fan_out):
        kw, kb = jax.random.split(key)
        bound = 1.0 / math.sqrt(fan_in)
        w = jax.random.uniform(kw, (fan_in, fan_out), jnp.float32, -bound, bound)
        b = jax.random.uniform(kb, (1, fan_out), jnp.float32, -bound, bound)
        return w, b

    k1, k2, k3 = jax.random.split(key, 3)
    w1, b1 = linear(k1, 32 * 32, 512)
    w2, b2 = linear(k2, 512, 256)
    w3, b3 = linear(k3, 256, 10)
    return w1, b1, w2, b2, w3, b3


def ref_forward(x, params, *, bf16_clip):
    """Pure-JAX reference with the same bf16 matmul-input / clip dtype choices."""
    w1, b1, w2, b2, w3, b3 = params
    B = x.shape[0]

    def act(z):
        if bf16_clip:
            return jnp.clip(z.astype(jnp.bfloat16), 0.0, 1.0)
        return jnp.clip(z, 0.0, 1.0).astype(jnp.bfloat16)

    xb = x.reshape(B, 32 * 32).astype(jnp.bfloat16)
    h1 = act(jnp.dot(xb, w1.astype(jnp.bfloat16),
                     preferred_element_type=jnp.float32) + b1)
    h2 = act(jnp.dot(h1, w2.astype(jnp.bfloat16),
                     preferred_element_type=jnp.float32) + b2)
    logits = jnp.dot(h2, w3.astype(jnp.bfloat16),
                     preferred_element_type=jnp.float32) + b3
    return jax.nn.log_softmax(logits, axis=-1)


if __name__ == "__main__":
    key = jax.random.PRNGKey(0)
    kx, kp = jax.random.split(key)

    B = 8
    x = jax.random.normal(kx, (B, 1, 32, 32), dtype=jnp.float32)   # NCHW input
    params = init_params(kp)
    prep = prepare_params(params)                                  # hoisted weight prep

    out = jax.block_until_ready(net_forward(x, prep))

    assert out.shape == (B, 10) and out.dtype == jnp.float32
    # log_softmax rows must (log-)normalize to ~0
    row_lse = jax.nn.logsumexp(out, axis=1)
    assert jnp.max(jnp.abs(row_lse)) < 1e-4
    # match the dtype-matched pure-JAX reference
    _, _, bf16_vpu = _tile_config()
    ref = ref_forward(x, params, bf16_clip=bf16_vpu)
    assert jnp.max(jnp.abs(out - ref)) < 5e-2

    print("KERNEL_OK")
</pallas_src>

<mosaic_0001>
module attributes {stable_mosaic.version = 11 : i64} {
  func.func @_mlp_kernel(%arg0: i32, %arg1: memref<16x1024xbf16, #tpu.memory_space<vmem>>, %arg2: memref<1024x512xbf16, #tpu.memory_space<vmem>>, %arg3: memref<1x512xf32, #tpu.memory_space<vmem>>, %arg4: memref<512x256xbf16, #tpu.memory_space<vmem>>, %arg5: memref<1x256xf32, #tpu.memory_space<vmem>>, %arg6: memref<256x128xbf16, #tpu.memory_space<vmem>>, %arg7: memref<1x128xf32, #tpu.memory_space<vmem>>, %arg8: memref<16x128xf32, #tpu.memory_space<vmem>>) attributes {dimension_semantics = [#tpu.dimension_semantics<parallel>], iteration_bounds = array<i64: 1>, scalar_prefetch = 0 : i64, scratch_operands = 0 : i64, tpu.core_type = #tpu.core_type<tc>, window_params = [{transform_indices = @transform_0, window_bounds = array<i64: 16, 1024>}, {pipeline_mode = #tpu.pipeline_mode<synchronous>, transform_indices = @transform_1, window_bounds = array<i64: 1024, 512>}, {pipeline_mode = #tpu.pipeline_mode<synchronous>, transform_indices = @transform_2, window_bounds = array<i64: 1, 512>}, {pipeline_mode = #tpu.pipeline_mode<synchronous>, transform_indices = @transform_3, window_bounds = array<i64: 512, 256>}, {pipeline_mode = #tpu.pipeline_mode<synchronous>, transform_indices = @transform_4, window_bounds = array<i64: 1, 256>}, {pipeline_mode = #tpu.pipeline_mode<synchronous>, transform_indices = @transform_5, window_bounds = array<i64: 256, 128>}, {pipeline_mode = #tpu.pipeline_mode<synchronous>, transform_indices = @transform_6, window_bounds = array<i64: 1, 128>}, {transform_indices = @transform_7, window_bounds = array<i64: 16, 128>}]} {
    %c0 = arith.constant 0 : index
    %c0_0 = arith.constant 0 : index
    %0 = vector.load %arg1[%c0, %c0_0] : memref<16x1024xbf16, #tpu.memory_space<vmem>>, vector<16x1024xbf16>
    %c0_1 = arith.constant 0 : index
    %c0_2 = arith.constant 0 : index
    %1 = vector.load %arg2[%c0_1, %c0_2] : memref<1024x512xbf16, #tpu.memory_space<vmem>>, vector<1024x512xbf16>
    %cst = arith.constant dense<0.000000e+00> : vector<16x512xf32>
    %2 = tpu.matmul %0, %1, %cst {dimension_numbers = #tpu.dot_dimension_numbers<[1], [0], [0], [1], [0, 0, 1, 1], [], []>} : vector<16x1024xbf16>, vector<1024x512xbf16>, vector<16x512xf32> -> vector<16x512xf32>
    %c0_3 = arith.constant 0 : index
    %c0_4 = arith.constant 0 : index
    %3 = vector.load %arg3[%c0_3, %c0_4] : memref<1x512xf32, #tpu.memory_space<vmem>>, vector<1x512xf32>
    %4 = vector.broadcast %3 : vector<1x512xf32> to vector<16x512xf32>
    %5 = arith.addf %2, %4 : vector<16x512xf32>
    %6 = arith.truncf %5 : vector<16x512xf32> to vector<16x512xbf16>
    %cst_5 = arith.constant 0.000000e+00 : f32
    %cst_6 = arith.constant 1.000000e+00 : f32
    %7 = arith.truncf %cst_5 : f32 to bf16
    %8 = vector.broadcast %7 : bf16 to vector<16x512xbf16>
    %9 = arith.maximumf %8, %6 : vector<16x512xbf16>
    %10 = arith.truncf %cst_6 : f32 to bf16
    %11 = vector.broadcast %10 : bf16 to vector<16x512xbf16>
    %12 = arith.minimumf %11, %9 : vector<16x512xbf16>
    %c0_7 = arith.constant 0 : index
    %c0_8 = arith.constant 0 : index
    %13 = vector.load %arg4[%c0_7, %c0_8] : memref<512x256xbf16, #tpu.memory_space<vmem>>, vector<512x256xbf16>
    %cst_9 = arith.constant dense<0.000000e+00> : vector<16x256xf32>
    %14 = tpu.matmul %12, %13, %cst_9 {dimension_numbers = #tpu.dot_dimension_numbers<[1], [0], [0], [1], [0, 0, 1, 1], [], []>} : vector<16x512xbf16>, vector<512x256xbf16>, vector<16x256xf32> -> vector<16x256xf32>
    %c0_10 = arith.constant 0 : index
    %c0_11 = arith.constant 0 : index
    %15 = vector.load %arg5[%c0_10, %c0_11] : memref<1x256xf32, #tpu.memory_space<vmem>>, vector<1x256xf32>
    %16 = vector.broadcast %15 : vector<1x256xf32> to vector<16x256xf32>
    %17 = arith.addf %14, %16 : vector<16x256xf32>
    %18 = arith.truncf %17 : vector<16x256xf32> to vector<16x256xbf16>
    %cst_12 = arith.constant 0.000000e+00 : f32
    %cst_13 = arith.constant 1.000000e+00 : f32
    %19 = arith.truncf %cst_12 : f32 to bf16
    %20 = vector.broadcast %19 : bf16 to vector<16x256xbf16>
    %21 = arith.maximumf %20, %18 : vector<16x256xbf16>
    %22 = arith.truncf %cst_13 : f32 to bf16
    %23 = vector.broadcast %22 : bf16 to vector<16x256xbf16>
    %24 = arith.minimumf %23, %21 : vector<16x256xbf16>
    %c0_14 = arith.constant 0 : index
    %c0_15 = arith.constant 0 : index
    %25 = vector.load %arg6[%c0_14, %c0_15] : memref<256x128xbf16, #tpu.memory_space<vmem>>, vector<256x128xbf16>
    %cst_16 = arith.constant dense<0.000000e+00> : vector<16x128xf32>
    %26 = tpu.matmul %24, %25, %cst_16 {dimension_numbers = #tpu.dot_dimension_numbers<[1], [0], [0], [1], [0, 0, 1, 1], [], []>} : vector<16x256xbf16>, vector<256x128xbf16>, vector<16x128xf32> -> vector<16x128xf32>
    %c0_17 = arith.constant 0 : index
    %c0_18 = arith.constant 0 : index
    %27 = vector.load %arg7[%c0_17, %c0_18] : memref<1x128xf32, #tpu.memory_space<vmem>>, vector<1x128xf32>
    %28 = vector.broadcast %27 : vector<1x128xf32> to vector<16x128xf32>
    %29 = arith.addf %26, %28 : vector<16x128xf32>
    %cst_19 = arith.constant dense<0xFF800000> : vector<16xf32>
    %30 = vector.multi_reduction <maximumf>, %29, %cst_19 [1] : vector<16x128xf32> to vector<16xf32>
    %31 = vector.shape_cast %30 : vector<16xf32> to vector<16x1xf32>
    %32 = vector.broadcast %31 : vector<16x1xf32> to vector<16x128xf32>
    %33 = arith.subf %29, %32 : vector<16x128xf32>
    %34 = math.exp %33 : vector<16x128xf32>
    %cst_20 = arith.constant dense<0.000000e+00> : vector<16xf32>
    %35 = vector.multi_reduction <add>, %34, %cst_20 [1] : vector<16x128xf32> to vector<16xf32>
    %36 = vector.shape_cast %35 : vector<16xf32> to vector<16x1xf32>
    %37 = math.log %36 : vector<16x1xf32>
    %38 = vector.broadcast %37 : vector<16x1xf32> to vector<16x128xf32>
    %39 = arith.subf %33, %38 : vector<16x128xf32>
    %c0_21 = arith.constant 0 : index
    %c0_22 = arith.constant 0 : index
    %40 = vector.load %arg8[%c0_21, %c0_22] : memref<16x128xf32, #tpu.memory_space<vmem>>, vector<16x128xf32>
    tpu.vector_store %arg8[%c0_21, %c0_22], %39 {strides = array<i32>} : memref<16x128xf32, #tpu.memory_space<vmem>>, vector<16x128xf32>,
    return
  }
  func.func @transform_0(%arg0: i32) -> (i32, i32) {
    %c0_i32 = arith.constant 0 : i32
    %c0_i32_0 = arith.constant 0 : i32
    return %arg0, %c0_i32 : i32, i32
  }
  func.func @transform_1(%arg0: i32) -> (i32, i32) {
    %c0_i32 = arith.constant 0 : i32
    %c0_i32_0 = arith.constant 0 : i32
    %c0_i32_1 = arith.constant 0 : i32
    return %c0_i32, %c0_i32_0 : i32, i32
  }
  func.func @transform_2(%arg0: i32) -> (i32, i32) {
    %c0_i32 = arith.constant 0 : i32
    %c0_i32_0 = arith.constant 0 : i32
    %c0_i32_1 = arith.constant 0 : i32
    return %c0_i32, %c0_i32_0 : i32, i32
  }
  func.func @transform_3(%arg0: i32) -> (i32, i32) {
    %c0_i32 = arith.constant 0 : i32
    %c0_i32_0 = arith.constant 0 : i32
    %c0_i32_1 = arith.constant 0 : i32
    return %c0_i32, %c0_i32_0 : i32, i32
  }
  func.func @transform_4(%arg0: i32) -> (i32, i32) {
    %c0_i32 = arith.constant 0 : i32
    %c0_i32_0 = arith.constant 0 : i32
    %c0_i32_1 = arith.constant 0 : i32
    return %c0_i32, %c0_i32_0 : i32, i32
  }
  func.func @transform_5(%arg0: i32) -> (i32, i32) {
    %c0_i32 = arith.constant 0 : i32
    %c0_i32_0 = arith.constant 0 : i32
    %c0_i32_1 = arith.constant 0 : i32
    return %c0_i32, %c0_i32_0 : i32, i32
  }
  func.func @transform_6(%arg0: i32) -> (i32, i32) {
    %c0_i32 = arith.constant 0 : i32
    %c0_i32_0 = arith.constant 0 : i32
    %c0_i32_1 = arith.constant 0 : i32
    return %c0_i32, %c0_i32_0 : i32, i32
  }
  func.func @transform_7(%arg0: i32) -> (i32, i32) {
    %c0_i32 = arith.constant 0 : i32
    %c0_i32_0 = arith.constant 0 : i32
    return %arg0, %c0_i32 : i32, i32
  }
}

</mosaic_0001>

<llo_original>
// kernel: tpu_custom_call.1
$region0: #{tpu_custom_call.1}
  #allocation0 [shape = 'u32[]', space=smem, size = 0x4, offset = 0x4, fixed_abs, tag = 'smem constant byte address 0x4 - core index']
  #allocation1 [shape = 'u32[144,128]{1,0:T(1,128)}', space=vmem, size = 0x12000, scoped, tag = 'internal scratch']
  %s0 = inlined_call_operand.hbm [shape: bf16[16,1024], index: 0, kind: input, shape index: {}]
  %s1 = inlined_call_operand.hbm [shape: bf16[1024,512], index: 1, kind: input, shape index: {}]
  %s2 = inlined_call_operand.vmem [shape: f32[1,512], index: 2, kind: input, shape index: {}]
  %s3 = inlined_call_operand.hbm [shape: bf16[512,256], index: 3, kind: input, shape index: {}]
  %s4 = inlined_call_operand.vmem [shape: f32[1,256], index: 4, kind: input, shape index: {}]
  %s5 = inlined_call_operand.hbm [shape: bf16[256,128], index: 5, kind: input, shape index: {}]
  %s6 = inlined_call_operand.vmem [shape: f32[1,128], index: 6, kind: input, shape index: {}]
  %s7 = inlined_call_operand.hbm [shape: f32[16,128], index: 7, kind: output, shape index: {}]
  %s8 = sld [smem:[#allocation0]]
  $region54: #{tpu_custom_call.1} parent=0
    _
  %s10 = ssub.s32 1, %s8
  %s11 = scalar_select 0, %s10, %s8
  $region1: #{tpu_custom_call.1} parent=0
    #allocation2 [shape = 'u8[32768]{0}', space=vmem, size = 0x8000, scoped, tag = 'input window, operand 0, single buffered']
    #allocation3 [shape = 's32[1]{0}', space=sflag, size = 0x4, scoped, tag = 'scoped memory for tpu_custom_call.1']
    #allocation4 [shape = 's32[1]{0}', space=sflag, size = 0x4, scoped, tag = 'scoped memory for tpu_custom_call.1']
    #allocation5 [shape = 'u8[1048576]{0}', space=vmem, size = 0x100000, scoped, tag = 'input window, operand 1, single buffered']
    #allocation6 [shape = 's32[1]{0}', space=sflag, size = 0x4, scoped, tag = 'scoped memory for tpu_custom_call.1']
    #allocation7 [shape = 'u8[262144]{0}', space=vmem, size = 0x40000, scoped, tag = 'input window, operand 3, single buffered']
    #allocation8 [shape = 'u8[65536]{0}', space=vmem, size = 0x10000, scoped, tag = 'input window, operand 5, single buffered']
    #allocation9 [shape = 's32[1]{0}', space=sflag, size = 0x4, scoped, tag = 'scoped memory for tpu_custom_call.1']
    #allocation10 [shape = 'u8[8192]{0}', space=vmem, size = 0x2000, scoped, tag = 'output window, operand 0, single buffered']
    %12 = vsyncpa [#allocation3], 0
    %13 = vsyncpa [#allocation6], 0
    %14 = vsyncpa [#allocation9], 0
    %15 = vsyncpa [#allocation4], 0
    // Predicated region
    $region2: #{tpu_custom_call.1} parent=1 // pred_check
      _
    $region3: #{tpu_custom_call.1} parent=1 // pred_check_branch
      %17 = sbr.rel (0) target = $region5
    $region4: #{tpu_custom_call.1} parent=1 // pred_region
      %s19 = ssub.s32 1024, 1024
      %20 = vsyncadd [#allocation3], %s19
      %s21 = sshll.u32 [#allocation2], 4
      %s22 = int_to_ptr.vmem [resolvable:$true] %s21
      %27 = dma.hbm_to_vmem [thread:$0]  %s0, 1024, %s22, [#allocation3], 512, 512, 32
    $region5: #{tpu_custom_call.1} parent=1 // pred_fallthru
      _
    // Predicated region
    $region6: #{tpu_custom_call.1} parent=1 // pred_check
      _
    $region7: #{tpu_custom_call.1} parent=1 // pred_check_branch
      %29 = sbr.rel (0) target = $region9
    $region8: #{tpu_custom_call.1} parent=1 // pred_region
      %s31 = ssub.s32 32768, 32768
      %32 = vsyncadd [#allocation6], %s31
      %s33 = sshll.u32 [#allocation5], 4
      %s34 = int_to_ptr.vmem [resolvable:$true] %s33
      %39 = dma.hbm_to_vmem [thread:$0]  %s1, 32768, %s34, [#allocation6], 256, 256, 16
    $region9: #{tpu_custom_call.1} parent=1 // pred_fallthru
      _
    // Predicated region
    $region10: #{tpu_custom_call.1} parent=1 // pred_check
      _
    $region11: #{tpu_custom_call.1} parent=1 // pred_check_branch
      %41 = sbr.rel (0) target = $region13
    $region12: #{tpu_custom_call.1} parent=1 // pred_region
      _
    $region13: #{tpu_custom_call.1} parent=1 // pred_fallthru
      _
    // Predicated region
    $region14: #{tpu_custom_call.1} parent=1 // pred_check
      _
    $region15: #{tpu_custom_call.1} parent=1 // pred_check_branch
      %43 = sbr.rel (0) target = $region17
    $region16: #{tpu_custom_call.1} parent=1 // pred_region
      %s45 = ssub.s32 8192, 8192
      %46 = vsyncadd [#allocation6], %s45
      %s47 = sshll.u32 [#allocation7], 4
      %s48 = int_to_ptr.vmem [resolvable:$true] %s47
      %53 = dma.hbm_to_vmem [thread:$0]  %s3, 8192, %s48, [#allocation6], 128, 128, 8
    $region17: #{tpu_custom_call.1} parent=1 // pred_fallthru
      _
    // Predicated region
    $region18: #{tpu_custom_call.1} parent=1 // pred_check
      _
    $region19: #{tpu_custom_call.1} parent=1 // pred_check_branch
      %55 = sbr.rel (0) target = $region21
    $region20: #{tpu_custom_call.1} parent=1 // pred_region
      _
    $region21: #{tpu_custom_call.1} parent=1 // pred_fallthru
      _
    // Predicated region
    $region22: #{tpu_custom_call.1} parent=1 // pred_check
      _
    $region23: #{tpu_custom_call.1} parent=1 // pred_check_branch
      %57 = sbr.rel (0) target = $region25
    $region24: #{tpu_custom_call.1} parent=1 // pred_region
      %s59 = ssub.s32 2048, 2048
      %60 = vsyncadd [#allocation9], %s59
      %s61 = sshll.u32 [#allocation8], 4
      %s62 = int_to_ptr.vmem [resolvable:$true] %s61
      %67 = dma.hbm_to_vmem [thread:$0]  %s5, 2048, %s62, [#allocation9], 64, 64, 4
    $region25: #{tpu_custom_call.1} parent=1 // pred_fallthru
      _
    // Predicated region
    $region26: #{tpu_custom_call.1} parent=1 // pred_check
      _
    $region27: #{tpu_custom_call.1} parent=1 // pred_check_branch
      %69 = sbr.rel (0) target = $region29
    $region28: #{tpu_custom_call.1} parent=1 // pred_region
      _
    $region29: #{tpu_custom_call.1} parent=1 // pred_fallthru
      _
    // Predicated region
    $region30: #{tpu_custom_call.1} parent=1 // pred_check
      _
    $region31: #{tpu_custom_call.1} parent=1 // pred_check_branch
      %71 = sbr.rel (0) target = $region33
    $region32: #{tpu_custom_call.1} parent=1 // pred_region
      %72 = dma.done [#allocation3], 1024
    $region33: #{tpu_custom_call.1} parent=1 // pred_fallthru
      _
    // Predicated region
    $region34: #{tpu_custom_call.1} parent=1 // pred_check
      _
    $region35: #{tpu_custom_call.1} parent=1 // pred_check_branch
      %74 = sbr.rel (0) target = $region37
    $region36: #{tpu_custom_call.1} parent=1 // pred_region
      %75 = dma.done [#allocation6], 32768
    $region37: #{tpu_custom_call.1} parent=1 // pred_fallthru
      _
    // Predicated region
    $region38: #{tpu_custom_call.1} parent=1 // pred_check
      _
    $region39: #{tpu_custom_call.1} parent=1 // pred_check_branch
      %77 = sbr.rel (0) target = $region41
    $region40: #{tpu_custom_call.1} parent=1 // pred_region
      %78 = dma.done [#allocation6], 8192
    $region41: #{tpu_custom_call.1} parent=1 // pred_fallthru
      _
    // Predicated region
    $region42: #{tpu_custom_call.1} parent=1 // pred_check
      _
    $region43: #{tpu_custom_call.1} parent=1 // pred_check_branch
      %80 = sbr.rel (0) target = $region45
    $region44: #{tpu_custom_call.1} parent=1 // pred_region
      %81 = dma.done [#allocation9], 2048
    $region45: #{tpu_custom_call.1} parent=1 // pred_fallthru
      _
    %v84 = vld [vmem:[#allocation2] sm:$0xff]
    %v85 = vld [vmem:[#allocation2 + $0x8] sm:$0xff]
    %v86 = vld [vmem:[#allocation2 + $0x10] sm:$0xff]
    %v87 = vld [vmem:[#allocation2 + $0x18] sm:$0xff]
    %v88 = vld [vmem:[#allocation2 + $0x20] sm:$0xff]
    %v89 = vld [vmem:[#allocation2 + $0x28] sm:$0xff]
    %v90 = vld [vmem:[#allocation2 + $0x30] sm:$0xff]
    %v91 = vld [vmem:[#allocation2 + $0x38] sm:$0xff]
    %v92 = vld [vmem:[#allocation5] sm:$0xff]
    %v93 = vld [vmem:[#allocation5 + $0x8] sm:$0xff]
    %v94 = vld [vmem:[#allocation5 + $0x10] sm:$0xff]
    %v95 = vld [vmem:[#allocation5 + $0x18] sm:$0xff]
    %v96 = vld [vmem:[#allocation5 + $0x20] sm:$0xff]
    %v97 = vld [vmem:[#allocation5 + $0x28] sm:$0xff]
    %v98 = vld [vmem:[#allocation5 + $0x30] sm:$0xff]
    %v99 = vld [vmem:[#allocation5 + $0x38] sm:$0xff]
    %v100 = vld [vmem:[#allocation5 + $0x40] sm:$0xff]
    %v101 = vld [vmem:[#allocation5 + $0x48] sm:$0xff]
    %v102 = vld [vmem:[#allocation5 + $0x50] sm:$0xff]
    %v103 = vld [vmem:[#allocation5 + $0x58] sm:$0xff]
    %v104 = vld [vmem:[#allocation5 + $0x60] sm:$0xff]
    %v105 = vld [vmem:[#allocation5 + $0x68] sm:$0xff]
    %v106 = vld [vmem:[#allocation5 + $0x70] sm:$0xff]
    %v107 = vld [vmem:[#allocation5 + $0x78] sm:$0xff]
    %v108 = vld [vmem:[#allocation5 + $0x80] sm:$0xff]
    %v109 = vld [vmem:[#allocation5 + $0x88] sm:$0xff]
    %v110 = vld [vmem:[#allocation5 + $0x90] sm:$0xff]
    %v111 = vld [vmem:[#allocation5 + $0x98] sm:$0xff]
    %v112 = vld [vmem:[#allocation5 + $0xa0] sm:$0xff]
    %v113 = vld [vmem:[#allocation5 + $0xa8] sm:$0xff]
    %v114 = vld [vmem:[#allocation5 + $0xb0] sm:$0xff]
    %v115 = vld [vmem:[#allocation5 + $0xb8] sm:$0xff]
    %v116 = vld [vmem:[#allocation5 + $0xc0] sm:$0xff]
    %v117 = vld [vmem:[#allocation5 + $0xc8] sm:$0xff]
    %v118 = vld [vmem:[#allocation5 + $0xd0] sm:$0xff]
    %v119 = vld [vmem:[#allocation5 + $0xd8] sm:$0xff]
    %v120 = vld [vmem:[#allocation5 + $0xe0] sm:$0xff]
    %v121 = vld [vmem:[#allocation5 + $0xe8] sm:$0xff]
    %v122 = vld [vmem:[#allocation5 + $0xf0] sm:$0xff]
    %v123 = vld [vmem:[#allocation5 + $0xf8] sm:$0xff]
    %v124 = vld [vmem:[#allocation5 + $0x100] sm:$0xff]
    %v125 = vld [vmem:[#allocation5 + $0x108] sm:$0xff]
    %v126 = vld [vmem:[#allocation5 + $0x110] sm:$0xff]
    %v127 = vld [vmem:[#allocation5 + $0x118] sm:$0xff]
    %v128 = vld [vmem:[#allocation5 + $0x120] sm:$0xff]
    %v129 = vld [vmem:[#allocation5 + $0x128] sm:$0xff]
    %v130 = vld [vmem:[#allocation5 + $0x130] sm:$0xff]
    %v131 = vld [vmem:[#allocation5 + $0x138] sm:$0xff]
    %v132 = vld [vmem:[#allocation5 + $0x140] sm:$0xff]
    %v133 = vld [vmem:[#allocation5 + $0x148] sm:$0xff]
    %v134 = vld [vmem:[#allocation5 + $0x150] sm:$0xff]
    %v135 = vld [vmem:[#allocation5 + $0x158] sm:$0xff]
    %v136 = vld [vmem:[#allocation5 + $0x160] sm:$0xff]
    %v137 = vld [vmem:[#allocation5 + $0x168] sm:$0xff]
    %v138 = vld [vmem:[#allocation5 + $0x170] sm:$0xff]
    %v139 = vld [vmem:[#allocation5 + $0x178] sm:$0xff]
    %v140 = vld [vmem:[#allocation5 + $0x180] sm:$0xff]
    %v141 = vld [vmem:[#allocation5 + $0x188] sm:$0xff]
    %v142 = vld [vmem:[#allocation5 + $0x190] sm:$0xff]
    %v143 = vld [vmem:[#allocation5 + $0x198] sm:$0xff]
    %v144 = vld [vmem:[#allocation5 + $0x1a0] sm:$0xff]
    %v145 = vld [vmem:[#allocation5 + $0x1a8] sm:$0xff]
    %v146 = vld [vmem:[#allocation5 + $0x1b0] sm:$0xff]
    %v147 = vld [vmem:[#allocation5 + $0x1b8] sm:$0xff]
    %v148 = vld [vmem:[#allocation5 + $0x1c0] sm:$0xff]
    %v149 = vld [vmem:[#allocation5 + $0x1c8] sm:$0xff]
    %v150 = vld [vmem:[#allocation5 + $0x1d0] sm:$0xff]
    %v151 = vld [vmem:[#allocation5 + $0x1d8] sm:$0xff]
    %v152 = vld [vmem:[#allocation5 + $0x1e0] sm:$0xff]
    %v153 = vld [vmem:[#allocation5 + $0x1e8] sm:$0xff]
    %v154 = vld [vmem:[#allocation5 + $0x1f0] sm:$0xff]
    %v155 = vld [vmem:[#allocation5 + $0x1f8] sm:$0xff]
    %v156 = vld [vmem:[#allocation5 + $0x200] sm:$0xff]
    %v157 = vld [vmem:[#allocation5 + $0x208] sm:$0xff]
    %v158 = vld [vmem:[#allocation5 + $0x210] sm:$0xff]
    %v159 = vld [vmem:[#allocation5 + $0x218] sm:$0xff]
    %v160 = vld [vmem:[#allocation5 + $0x220] sm:$0xff]
    %v161 = vld [vmem:[#allocation5 + $0x228] sm:$0xff]
    %v162 = vld [vmem:[#allocation5 + $0x230] sm:$0xff]
    %v163 = vld [vmem:[#allocation5 + $0x238] sm:$0xff]
    %v164 = vld [vmem:[#allocation5 + $0x240] sm:$0xff]
    %v165 = vld [vmem:[#allocation5 + $0x248] sm:$0xff]
    %v166 = vld [vmem:[#allocation5 + $0x250] sm:$0xff]
    %v167 = vld [vmem:[#allocation5 + $0x258] sm:$0xff]
    %v168 = vld [vmem:[#allocation5 + $0x260] sm:$0xff]
    %v169 = vld [vmem:[#allocation5 + $0x268] sm:$0xff]
    %v170 = vld [vmem:[#allocation5 + $0x270] sm:$0xff]
    %v171 = vld [vmem:[#allocation5 + $0x278] sm:$0xff]
    %v172 = vld [vmem:[#allocation5 + $0x280] sm:$0xff]
    %v173 = vld [vmem:[#allocation5 + $0x288] sm:$0xff]
    %v174 = vld [vmem:[#allocation5 + $0x290] sm:$0xff]
    %v175 = vld [vmem:[#allocation5 + $0x298] sm:$0xff]
    %v176 = vld [vmem:[#allocation5 + $0x2a0] sm:$0xff]
    %v177 = vld [vmem:[#allocation5 + $0x2a8] sm:$0xff]
    %v178 = vld [vmem:[#allocation5 + $0x2b0] sm:$0xff]
    %v179 = vld [vmem:[#allocation5 + $0x2b8] sm:$0xff]
    %v180 = vld [vmem:[#allocation5 + $0x2c0] sm:$0xff]
    %v181 = vld [vmem:[#allocation5 + $0x2c8] sm:$0xff]
    %v182 = vld [vmem:[#allocation5 + $0x2d0] sm:$0xff]
    %v183 = vld [vmem:[#allocation5 + $0x2d8] sm:$0xff]
    %v184 = vld [vmem:[#allocation5 + $0x2e0] sm:$0xff]
    %v185 = vld [vmem:[#allocation5 + $0x2e8] sm:$0xff]
    %v186 = vld [vmem:[#allocation5 + $0x2f0] sm:$0xff]
    %v187 = vld [vmem:[#allocation5 + $0x2f8] sm:$0xff]
    %v188 = vld [vmem:[#allocation5 + $0x300] sm:$0xff]
    %v189 = vld [vmem:[#allocation5 + $0x308] sm:$0xff]
    %v190 = vld [vmem:[#allocation5 + $0x310] sm:$0xff]
    %v191 = vld [vmem:[#allocation5 + $0x318] sm:$0xff]
    %v192 = vld [vmem:[#allocation5 + $0x320] sm:$0xff]
    %v193 = vld [vmem:[#allocation5 + $0x328] sm:$0xff]
    %v194 = vld [vmem:[#allocation5 + $0x330] sm:$0xff]
    %v195 = vld [vmem:[#allocation5 + $0x338] sm:$0xff]
    %v196 = vld [vmem:[#allocation5 + $0x340] sm:$0xff]
    %v197 = vld [vmem:[#allocation5 + $0x348] sm:$0xff]
    %v198 = vld [vmem:[#allocation5 + $0x350] sm:$0xff]
    %v199 = vld [vmem:[#allocation5 + $0x358] sm:$0xff]
    %v200 = vld [vmem:[#allocation5 + $0x360] sm:$0xff]
    %v201 = vld [vmem:[#allocation5 + $0x368] sm:$0xff]
    %v202 = vld [vmem:[#allocation5 + $0x370] sm:$0xff]
    %v203 = vld [vmem:[#allocation5 + $0x378] sm:$0xff]
    %v204 = vld [vmem:[#allocation5 + $0x380] sm:$0xff]
    %v205 = vld [vmem:[#allocation5 + $0x388] sm:$0xff]
    %v206 = vld [vmem:[#allocation5 + $0x390] sm:$0xff]
    %v207 = vld [vmem:[#allocation5 + $0x398] sm:$0xff]
    %v208 = vld [vmem:[#allocation5 + $0x3a0] sm:$0xff]
    %v209 = vld [vmem:[#allocation5 + $0x3a8] sm:$0xff]
    %v210 = vld [vmem:[#allocation5 + $0x3b0] sm:$0xff]
    %v211 = vld [vmem:[#allocation5 + $0x3b8] sm:$0xff]
    %v212 = vld [vmem:[#allocation5 + $0x3c0] sm:$0xff]
    %v213 = vld [vmem:[#allocation5 + $0x3c8] sm:$0xff]
    %v214 = vld [vmem:[#allocation5 + $0x3d0] sm:$0xff]
    %v215 = vld [vmem:[#allocation5 + $0x3d8] sm:$0xff]
    %v216 = vld [vmem:[#allocation5 + $0x3e0] sm:$0xff]
    %v217 = vld [vmem:[#allocation5 + $0x3e8] sm:$0xff]
    %v218 = vld [vmem:[#allocation5 + $0x3f0] sm:$0xff]
    %v219 = vld [vmem:[#allocation5 + $0x3f8] sm:$0xff]
    %v220 = vld [vmem:[#allocation5 + $0x400] sm:$0xff]
    %v221 = vld [vmem:[#allocation5 + $0x408] sm:$0xff]
    %v222 = vld [vmem:[#allocation5 + $0x410] sm:$0xff]
    %v223 = vld [vmem:[#allocation5 + $0x418] sm:$0xff]
    %v224 = vld [vmem:[#allocation5 + $0x420] sm:$0xff]
    %v225 = vld [vmem:[#allocation5 + $0x428] sm:$0xff]
    %v226 = vld [vmem:[#allocation5 + $0x430] sm:$0xff]
    %v227 = vld [vmem:[#allocation5 + $0x438] sm:$0xff]
    %v228 = vld [vmem:[#allocation5 + $0x440] sm:$0xff]
    %v229 = vld [vmem:[#allocation5 + $0x448] sm:$0xff]
    %v230 = vld [vmem:[#allocation5 + $0x450] sm:$0xff]
    %v231 = vld [vmem:[#allocation5 + $0x458] sm:$0xff]
    %v232 = vld [vmem:[#allocation5 + $0x460] sm:$0xff]
    %v233 = vld [vmem:[#allocation5 + $0x468] sm:$0xff]
    %v234 = vld [vmem:[#allocation5 + $0x470] sm:$0xff]
    %v235 = vld [vmem:[#allocation5 + $0x478] sm:$0xff]
    %v236 = vld [vmem:[#allocation5 + $0x480] sm:$0xff]
    %v237 = vld [vmem:[#allocation5 + $0x488] sm:$0xff]
    %v238 = vld [vmem:[#allocation5 + $0x490] sm:$0xff]
    %v239 = vld [vmem:[#allocation5 + $0x498] sm:$0xff]
    %v240 = vld [vmem:[#allocation5 + $0x4a0] sm:$0xff]
    %v241 = vld [vmem:[#allocation5 + $0x4a8] sm:$0xff]
    %v242 = vld [vmem:[#allocation5 + $0x4b0] sm:$0xff]
    %v243 = vld [vmem:[#allocation5 + $0x4b8] sm:$0xff]
    %v244 = vld [vmem:[#allocation5 + $0x4c0] sm:$0xff]
    %v245 = vld [vmem:[#allocation5 + $0x4c8] sm:$0xff]
    %v246 = vld [vmem:[#allocation5 + $0x4d0] sm:$0xff]
    %v247 = vld [vmem:[#allocation5 + $0x4d8] sm:$0xff]
    %v248 = vld [vmem:[#allocation5 + $0x4e0] sm:$0xff]
    %v249 = vld [vmem:[#allocation5 + $0x4e8] sm:$0xff]
    %v250 = vld [vmem:[#allocation5 + $0x4f0] sm:$0xff]
    %v251 = vld [vmem:[#allocation5 + $0x4f8] sm:$0xff]
    %v252 = vld [vmem:[#allocation5 + $0x500] sm:$0xff]
    %v253 = vld [vmem:[#allocation5 + $0x508] sm:$0xff]
    %v254 = vld [vmem:[#allocation5 + $0x510] sm:$0xff]
    %v255 = vld [vmem:[#allocation5 + $0x518] sm:$0xff]
    %v256 = vld [vmem:[#allocation5 + $0x520] sm:$0xff]
    %v257 = vld [vmem:[#allocation5 + $0x528] sm:$0xff]
    %v258 = vld [vmem:[#allocation5 + $0x530] sm:$0xff]
    %v259 = vld [vmem:[#allocation5 + $0x538] sm:$0xff]
    %v260 = vld [vmem:[#allocation5 + $0x540] sm:$0xff]
    %v261 = vld [vmem:[#allocation5 + $0x548] sm:$0xff]
    %v262 = vld [vmem:[#allocation5 + $0x550] sm:$0xff]
    %v263 = vld [vmem:[#allocation5 + $0x558] sm:$0xff]
    %v264 = vld [vmem:[#allocation5 + $0x560] sm:$0xff]
    %v265 = vld [vmem:[#allocation5 + $0x568] sm:$0xff]
    %v266 = vld [vmem:[#allocation5 + $0x570] sm:$0xff]
    %v267 = vld [vmem:[#allocation5 + $0x578] sm:$0xff]
    %v268 = vld [vmem:[#allocation5 + $0x580] sm:$0xff]
    %v269 = vld [vmem:[#allocation5 + $0x588] sm:$0xff]
    %v270 = vld [vmem:[#allocation5 + $0x590] sm:$0xff]
    %v271 = vld [vmem:[#allocation5 + $0x598] sm:$0xff]
    %v272 = vld [vmem:[#allocation5 + $0x5a0] sm:$0xff]
    %v273 = vld [vmem:[#allocation5 + $0x5a8] sm:$0xff]
    %v274 = vld [vmem:[#allocation5 + $0x5b0] sm:$0xff]
    %v275 = vld [vmem:[#allocation5 + $0x5b8] sm:$0xff]
    %v276 = vld [vmem:[#allocation5 + $0x5c0] sm:$0xff]
    %v277 = vld [vmem:[#allocation5 + $0x5c8] sm:$0xff]
    %v278 = vld [vmem:[#allocation5 + $0x5d0] sm:$0xff]
    %v279 = vld [vmem:[#allocation5 + $0x5d8] sm:$0xff]
    %v280 = vld [vmem:[#allocation5 + $0x5e0] sm:$0xff]
    %v281 = vld [vmem:[#allocation5 + $0x5e8] sm:$0xff]
    %v282 = vld [vmem:[#allocation5 + $0x5f0] sm:$0xff]
    %v283 = vld [vmem:[#allocation5 + $0x5f8] sm:$0xff]
    %v284 = vld [vmem:[#allocation5 + $0x600] sm:$0xff]
    %v285 = vld [vmem:[#allocation5 + $0x608] sm:$0xff]
    %v286 = vld [vmem:[#allocation5 + $0x610] sm:$0xff]
    %v287 = vld [vmem:[#allocation5 + $0x618] sm:$0xff]
    %v288 = vld [vmem:[#allocation5 + $0x620] sm:$0xff]
    %v289 = vld [vmem:[#allocation5 + $0x628] sm:$0xff]
    %v290 = vld [vmem:[#allocation5 + $0x630] sm:$0xff]
    %v291 = vld [vmem:[#allocation5 + $0x638] sm:$0xff]
    %v292 = vld [vmem:[#allocation5 + $0x640] sm:$0xff]
    %v293 = vld [vmem:[#allocation5 + $0x648] sm:$0xff]
    %v294 = vld [vmem:[#allocation5 + $0x650] sm:$0xff]
    %v295 = vld [vmem:[#allocation5 + $0x658] sm:$0xff]
    %v296 = vld [vmem:[#allocation5 + $0x660] sm:$0xff]
    %v297 = vld [vmem:[#allocation5 + $0x668] sm:$0xff]
    %v298 = vld [vmem:[#allocation5 + $0x670] sm:$0xff]
    %v299 = vld [vmem:[#allocation5 + $0x678] sm:$0xff]
    %v300 = vld [vmem:[#allocation5 + $0x680] sm:$0xff]
    %v301 = vld [vmem:[#allocation5 + $0x688] sm:$0xff]
    %v302 = vld [vmem:[#allocation5 + $0x690] sm:$0xff]
    %v303 = vld [vmem:[#allocation5 + $0x698] sm:$0xff]
    %v304 = vld [vmem:[#allocation5 + $0x6a0] sm:$0xff]
    %v305 = vld [vmem:[#allocation5 + $0x6a8] sm:$0xff]
    %v306 = vld [vmem:[#allocation5 + $0x6b0] sm:$0xff]
    %v307 = vld [vmem:[#allocation5 + $0x6b8] sm:$0xff]
    %v308 = vld [vmem:[#allocation5 + $0x6c0] sm:$0xff]
    %v309 = vld [vmem:[#allocation5 + $0x6c8] sm:$0xff]
    %v310 = vld [vmem:[#allocation5 + $0x6d0] sm:$0xff]
    %v311 = vld [vmem:[#allocation5 + $0x6d8] sm:$0xff]
    %v312 = vld [vmem:[#allocation5 + $0x6e0] sm:$0xff]
    %v313 = vld [vmem:[#allocation5 + $0x6e8] sm:$0xff]
    %v314 = vld [vmem:[#allocation5 + $0x6f0] sm:$0xff]
    %v315 = vld [vmem:[#allocation5 + $0x6f8] sm:$0xff]
    %v316 = vld [vmem:[#allocation5 + $0x700] sm:$0xff]
    %v317 = vld [vmem:[#allocation5 + $0x708] sm:$0xff]
    %v318 = vld [vmem:[#allocation5 + $0x710] sm:$0xff]
    %v319 = vld [vmem:[#allocation5 + $0x718] sm:$0xff]
    %v320 = vld [vmem:[#allocation5 + $0x720] sm:$0xff]
    %v321 = vld [vmem:[#allocation5 + $0x728] sm:$0xff]
    %v322 = vld [vmem:[#allocation5 + $0x730] sm:$0xff]
    %v323 = vld [vmem:[#allocation5 + $0x738] sm:$0xff]
    %v324 = vld [vmem:[#allocation5 + $0x740] sm:$0xff]
    %v325 = vld [vmem:[#allocation5 + $0x748] sm:$0xff]
    %v326 = vld [vmem:[#allocation5 + $0x750] sm:$0xff]
    %v327 = vld [vmem:[#allocation5 + $0x758] sm:$0xff]
    %v328 = vld [vmem:[#allocation5 + $0x760] sm:$0xff]
    %v329 = vld [vmem:[#allocation5 + $0x768] sm:$0xff]
    %v330 = vld [vmem:[#allocation5 + $0x770] sm:$0xff]
    %v331 = vld [vmem:[#allocation5 + $0x778] sm:$0xff]
    %v332 = vld [vmem:[#allocation5 + $0x780] sm:$0xff]
    %v333 = vld [vmem:[#allocation5 + $0x788] sm:$0xff]
    %v334 = vld [vmem:[#allocation5 + $0x790] sm:$0xff]
    %v335 = vld [vmem:[#allocation5 + $0x798] sm:$0xff]
    %v336 = vld [vmem:[#allocation5 + $0x7a0] sm:$0xff]
    %v337 = vld [vmem:[#allocation5 + $0x7a8] sm:$0xff]
    %v338 = vld [vmem:[#allocation5 + $0x7b0] sm:$0xff]
    %v339 = vld [vmem:[#allocation5 + $0x7b8] sm:$0xff]
    %v340 = vld [vmem:[#allocation5 + $0x7c0] sm:$0xff]
    %v341 = vld [vmem:[#allocation5 + $0x7c8] sm:$0xff]
    %v342 = vld [vmem:[#allocation5 + $0x7d0] sm:$0xff]
    %v343 = vld [vmem:[#allocation5 + $0x7d8] sm:$0xff]
    %v344 = vld [vmem:[#allocation5 + $0x7e0] sm:$0xff]
    %v345 = vld [vmem:[#allocation5 + $0x7e8] sm:$0xff]
    %v346 = vld [vmem:[#allocation5 + $0x7f0] sm:$0xff]
    %v347 = vld [vmem:[#allocation5 + $0x7f8] sm:$0xff]
    %v348 = vld [vmem:[%s2] sm:$0xf]
    %v350 = vlaneseq
    %v351 = vshrl.u32 %v350, 7
    %v352 = vsub.s32 0, %v351
    %v353 = vrot.slane %v348, %v352
    %v354 = vlaneseq
    %v355 = vshrl.u32 %v354, 7
    %v356 = vsub.s32 1, %v355
    %v357 = vrot.slane %v348, %v356
    %v358 = vlaneseq
    %v359 = vshrl.u32 %v358, 7
    %v360 = vsub.s32 2, %v359
    %v361 = vrot.slane %v348, %v360
    %v362 = vlaneseq
    %v363 = vshrl.u32 %v362, 7
    %v364 = vsub.s32 3, %v363
    %v365 = vrot.slane %v348, %v364
    %v378 = vunpack.c.l.b16 %v84
    %v379 = vunpack.c.h.b16 %v84
    %v380 = vunpack.c.l.b16 %v85
    %v381 = vunpack.c.h.b16 %v85
    %v382 = vunpack.c.l.b16 %v86
    %v383 = vunpack.c.h.b16 %v86
    %v384 = vunpack.c.l.b16 %v87
    %v385 = vunpack.c.h.b16 %v87
    %v386 = vunpack.c.l.b16 %v88
    %v387 = vunpack.c.h.b16 %v88
    %v388 = vunpack.c.l.b16 %v89
    %v389 = vunpack.c.h.b16 %v89
    %v390 = vunpack.c.l.b16 %v90
    %v391 = vunpack.c.h.b16 %v90
    %v392 = vunpack.c.l.b16 %v91
    %v393 = vunpack.c.h.b16 %v91
    %v394 = vpack.c.b16 %v386, %v378
    %v395 = vpack.c.b16 %v387, %v379
    %v396 = vpack.c.b16 %v388, %v380
    %v397 = vpack.c.b16 %v389, %v381
    %v398 = vpack.c.b16 %v390, %v382
    %v399 = vpack.c.b16 %v391, %v383
    %v400 = vpack.c.b16 %v392, %v384
    %v401 = vpack.c.b16 %v393, %v385
    %v666 = vunpack.c.l.b16 %v92
    %v667 = vunpack.c.h.b16 %v92
    %v668 = vunpack.c.l.b16 %v93
    %v669 = vunpack.c.h.b16 %v93
    %v670 = vunpack.c.l.b16 %v94
    %v671 = vunpack.c.h.b16 %v94
    %v672 = vunpack.c.l.b16 %v95
    %v673 = vunpack.c.h.b16 %v95
    %v674 = vunpack.c.l.b16 %v96
    %v675 = vunpack.c.h.b16 %v96
    %v676 = vunpack.c.l.b16 %v97
    %v677 = vunpack.c.h.b16 %v97
    %v678 = vunpack.c.l.b16 %v98
    %v679 = vunpack.c.h.b16 %v98
    %v680 = vunpack.c.l.b16 %v99
    %v681 = vunpack.c.h.b16 %v99
    %v682 = vunpack.c.l.b16 %v100
    %v683 = vunpack.c.h.b16 %v100
    %v684 = vunpack.c.l.b16 %v101
    %v685 = vunpack.c.h.b16 %v101
    %v686 = vunpack.c.l.b16 %v102
    %v687 = vunpack.c.h.b16 %v102
    %v688 = vunpack.c.l.b16 %v103
    %v689 = vunpack.c.h.b16 %v103
    %v690 = vunpack.c.l.b16 %v104
    %v691 = vunpack.c.h.b16 %v104
    %v692 = vunpack.c.l.b16 %v105
    %v693 = vunpack.c.h.b16 %v105
    %v694 = vunpack.c.l.b16 %v106
    %v695 = vunpack.c.h.b16 %v106
    %v696 = vunpack.c.l.b16 %v107
    %v697 = vunpack.c.h.b16 %v107
    %v698 = vunpack.c.l.b16 %v108
    %v699 = vunpack.c.h.b16 %v108
    %v700 = vunpack.c.l.b16 %v109
    %v701 = vunpack.c.h.b16 %v109
    %v702 = vunpack.c.l.b16 %v110
    %v703 = vunpack.c.h.b16 %v110
    %v704 = vunpack.c.l.b16 %v111
    %v705 = vunpack.c.h.b16 %v111
    %v706 = vunpack.c.l.b16 %v112
    %v707 = vunpack.c.h.b16 %v112
    %v708 = vunpack.c.l.b16 %v113
    %v709 = vunpack.c.h.b16 %v113
    %v710 = vunpack.c.l.b16 %v114
    %v711 = vunpack.c.h.b16 %v114
    %v712 = vunpack.c.l.b16 %v115
    %v713 = vunpack.c.h.b16 %v115
    %v714 = vunpack.c.l.b16 %v116
    %v715 = vunpack.c.h.b16 %v116
    %v716 = vunpack.c.l.b16 %v117
    %v717 = vunpack.c.h.b16 %v117
    %v718 = vunpack.c.l.b16 %v118
    %v719 = vunpack.c.h.b16 %v118
    %v720 = vunpack.c.l.b16 %v119
    %v721 = vunpack.c.h.b16 %v119
    %v722 = vunpack.c.l.b16 %v120
    %v723 = vunpack.c.h.b16 %v120
    %v724 = vunpack.c.l.b16 %v121
    %v725 = vunpack.c.h.b16 %v121
    %v726 = vunpack.c.l.b16 %v122
    %v727 = vunpack.c.h.b16 %v122
    %v728 = vunpack.c.l.b16 %v123
    %v729 = vunpack.c.h.b16 %v123
    %v730 = vunpack.c.l.b16 %v124
    %v731 = vunpack.c.h.b16 %v124
    %v732 = vunpack.c.l.b16 %v125
    %v733 = vunpack.c.h.b16 %v125
    %v734 = vunpack.c.l.b16 %v126
    %v735 = vunpack.c.h.b16 %v126
    %v736 = vunpack.c.l.b16 %v127
    %v737 = vunpack.c.h.b16 %v127
    %v738 = vunpack.c.l.b16 %v128
    %v739 = vunpack.c.h.b16 %v128
    %v740 = vunpack.c.l.b16 %v129
    %v741 = vunpack.c.h.b16 %v129
    %v742 = vunpack.c.l.b16 %v130
    %v743 = vunpack.c.h.b16 %v130
    %v744 = vunpack.c.l.b16 %v131
    %v745 = vunpack.c.h.b16 %v131
    %v746 = vunpack.c.l.b16 %v132
    %v747 = vunpack.c.h.b16 %v132
    %v748 = vunpack.c.l.b16 %v133
    %v749 = vunpack.c.h.b16 %v133
    %v750 = vunpack.c.l.b16 %v134
    %v751 = vunpack.c.h.b16 %v134
    %v752 = vunpack.c.l.b16 %v135
    %v753 = vunpack.c.h.b16 %v135
    %v754 = vunpack.c.l.b16 %v136
    %v755 = vunpack.c.h.b16 %v136
    %v756 = vunpack.c.l.b16 %v137
    %v757 = vunpack.c.h.b16 %v137
    %v758 = vunpack.c.l.b16 %v138
    %v759 = vunpack.c.h.b16 %v138
    %v760 = vunpack.c.l.b16 %v139
    %v761 = vunpack.c.h.b16 %v139
    %v762 = vunpack.c.l.b16 %v140
    %v763 = vunpack.c.h.b16 %v140
    %v764 = vunpack.c.l.b16 %v141
    %v765 = vunpack.c.h.b16 %v141
    %v766 = vunpack.c.l.b16 %v142
    %v767 = vunpack.c.h.b16 %v142
    %v768 = vunpack.c.l.b16 %v143
    %v769 = vunpack.c.h.b16 %v143
    %v770 = vunpack.c.l.b16 %v144
    %v771 = vunpack.c.h.b16 %v144
    %v772 = vunpack.c.l.b16 %v145
    %v773 = vunpack.c.h.b16 %v145
    %v774 = vunpack.c.l.b16 %v146
    %v775 = vunpack.c.h.b16 %v146
    %v776 = vunpack.c.l.b16 %v147
    %v777 = vunpack.c.h.b16 %v147
    %v778 = vunpack.c.l.b16 %v148
    %v779 = vunpack.c.h.b16 %v148
    %v780 = vunpack.c.l.b16 %v149
    %v781 = vunpack.c.h.b16 %v149
    %v782 = vunpack.c.l.b16 %v150
    %v783 = vunpack.c.h.b16 %v150
    %v784 = vunpack.c.l.b16 %v151
    %v785 = vunpack.c.h.b16 %v151
    %v786 = vunpack.c.l.b16 %v152
    %v787 = vunpack.c.h.b16 %v152
    %v788 = vunpack.c.l.b16 %v153
    %v789 = vunpack.c.h.b16 %v153
    %v790 = vunpack.c.l.b16 %v154
    %v791 = vunpack.c.h.b16 %v154
    %v792 = vunpack.c.l.b16 %v155
    %v793 = vunpack.c.h.b16 %v155
    %v794 = vunpack.c.l.b16 %v156
    %v795 = vunpack.c.h.b16 %v156
    %v796 = vunpack.c.l.b16 %v157
    %v797 = vunpack.c.h.b16 %v157
    %v798 = vunpack.c.l.b16 %v158
    %v799 = vunpack.c.h.b16 %v158
    %v800 = vunpack.c.l.b16 %v159
    %v801 = vunpack.c.h.b16 %v159
    %v802 = vunpack.c.l.b16 %v160
    %v803 = vunpack.c.h.b16 %v160
    %v804 = vunpack.c.l.b16 %v161
    %v805 = vunpack.c.h.b16 %v161
    %v806 = vunpack.c.l.b16 %v162
    %v807 = vunpack.c.h.b16 %v162
    %v808 = vunpack.c.l.b16 %v163
    %v809 = vunpack.c.h.b16 %v163
    %v810 = vunpack.c.l.b16 %v164
    %v811 = vunpack.c.h.b16 %v164
    %v812 = vunpack.c.l.b16 %v165
    %v813 = vunpack.c.h.b16 %v165
    %v814 = vunpack.c.l.b16 %v166
    %v815 = vunpack.c.h.b16 %v166
    %v816 = vunpack.c.l.b16 %v167
    %v817 = vunpack.c.h.b16 %v167
    %v818 = vunpack.c.l.b16 %v168
    %v819 = vunpack.c.h.b16 %v168
    %v820 = vunpack.c.l.b16 %v169
    %v821 = vunpack.c.h.b16 %v169
    %v822 = vunpack.c.l.b16 %v170
    %v823 = vunpack.c.h.b16 %v170
    %v824 = vunpack.c.l.b16 %v171
    %v825 = vunpack.c.h.b16 %v171
    %v826 = vunpack.c.l.b16 %v172
    %v827 = vunpack.c.h.b16 %v172
    %v828 = vunpack.c.l.b16 %v173
    %v829 = vunpack.c.h.b16 %v173
    %v830 = vunpack.c.l.b16 %v174
    %v831 = vunpack.c.h.b16 %v174
    %v832 = vunpack.c.l.b16 %v175
    %v833 = vunpack.c.h.b16 %v175
    %v834 = vunpack.c.l.b16 %v176
    %v835 = vunpack.c.h.b16 %v176
    %v836 = vunpack.c.l.b16 %v177
    %v837 = vunpack.c.h.b16 %v177
    %v838 = vunpack.c.l.b16 %v178
    %v839 = vunpack.c.h.b16 %v178
    %v840 = vunpack.c.l.b16 %v179
    %v841 = vunpack.c.h.b16 %v179
    %v842 = vunpack.c.l.b16 %v180
    %v843 = vunpack.c.h.b16 %v180
    %v844 = vunpack.c.l.b16 %v181
    %v845 = vunpack.c.h.b16 %v181
    %v846 = vunpack.c.l.b16 %v182
    %v847 = vunpack.c.h.b16 %v182
    %v848 = vunpack.c.l.b16 %v183
    %v849 = vunpack.c.h.b16 %v183
    %v850 = vunpack.c.l.b16 %v184
    %v851 = vunpack.c.h.b16 %v184
    %v852 = vunpack.c.l.b16 %v185
    %v853 = vunpack.c.h.b16 %v185
    %v854 = vunpack.c.l.b16 %v186
    %v855 = vunpack.c.h.b16 %v186
    %v856 = vunpack.c.l.b16 %v187
    %v857 = vunpack.c.h.b16 %v187
    %v858 = vunpack.c.l.b16 %v188
    %v859 = vunpack.c.h.b16 %v188
    %v860 = vunpack.c.l.b16 %v189
    %v861 = vunpack.c.h.b16 %v189
    %v862 = vunpack.c.l.b16 %v190
    %v863 = vunpack.c.h.b16 %v190
    %v864 = vunpack.c.l.b16 %v191
    %v865 = vunpack.c.h.b16 %v191
    %v866 = vunpack.c.l.b16 %v192
    %v867 = vunpack.c.h.b16 %v192
    %v868 = vunpack.c.l.b16 %v193
    %v869 = vunpack.c.h.b16 %v193
    %v870 = vunpack.c.l.b16 %v194
    %v871 = vunpack.c.h.b16 %v194
    %v872 = vunpack.c.l.b16 %v195
    %v873 = vunpack.c.h.b16 %v195
    %v874 = vunpack.c.l.b16 %v196
    %v875 = vunpack.c.h.b16 %v196
    %v876 = vunpack.c.l.b16 %v197
    %v877 = vunpack.c.h.b16 %v197
    %v878 = vunpack.c.l.b16 %v198
    %v879 = vunpack.c.h.b16 %v198
    %v880 = vunpack.c.l.b16 %v199
    %v881 = vunpack.c.h.b16 %v199
    %v882 = vunpack.c.l.b16 %v200
    %v883 = vunpack.c.h.b16 %v200
    %v884 = vunpack.c.l.b16 %v201
    %v885 = vunpack.c.h.b16 %v201
    %v886 = vunpack.c.l.b16 %v202
    %v887 = vunpack.c.h.b16 %v202
    %v888 = vunpack.c.l.b16 %v203
    %v889 = vunpack.c.h.b16 %v203
    %v890 = vunpack.c.l.b16 %v204
    %v891 = vunpack.c.h.b16 %v204
    %v892 = vunpack.c.l.b16 %v205
    %v893 = vunpack.c.h.b16 %v205
    %v894 = vunpack.c.l.b16 %v206
    %v895 = vunpack.c.h.b16 %v206
    %v896 = vunpack.c.l.b16 %v207
    %v897 = vunpack.c.h.b16 %v207
    %v898 = vunpack.c.l.b16 %v208
    %v899 = vunpack.c.h.b16 %v208
    %v900 = vunpack.c.l.b16 %v209
    %v901 = vunpack.c.h.b16 %v209
    %v902 = vunpack.c.l.b16 %v210
    %v903 = vunpack.c.h.b16 %v210
    %v904 = vunpack.c.l.b16 %v211
    %v905 = vunpack.c.h.b16 %v211
    %v906 = vunpack.c.l.b16 %v212
    %v907 = vunpack.c.h.b16 %v212
    %v908 = vunpack.c.l.b16 %v213
    %v909 = vunpack.c.h.b16 %v213
    %v910 = vunpack.c.l.b16 %v214
    %v911 = vunpack.c.h.b16 %v214
    %v912 = vunpack.c.l.b16 %v215
    %v913 = vunpack.c.h.b16 %v215
    %v914 = vunpack.c.l.b16 %v216
    %v915 = vunpack.c.h.b16 %v216
    %v916 = vunpack.c.l.b16 %v217
    %v917 = vunpack.c.h.b16 %v217
    %v918 = vunpack.c.l.b16 %v218
    %v919 = vunpack.c.h.b16 %v218
    %v920 = vunpack.c.l.b16 %v219
    %v921 = vunpack.c.h.b16 %v219
    %v922 = vunpack.c.l.b16 %v220
    %v923 = vunpack.c.h.b16 %v220
    %v924 = vunpack.c.l.b16 %v221
    %v925 = vunpack.c.h.b16 %v221
    %v926 = vunpack.c.l.b16 %v222
    %v927 = vunpack.c.h.b16 %v222
    %v928 = vunpack.c.l.b16 %v223
    %v929 = vunpack.c.h.b16 %v223
    %v930 = vunpack.c.l.b16 %v224
    %v931 = vunpack.c.h.b16 %v224
    %v932 = vunpack.c.l.b16 %v225
    %v933 = vunpack.c.h.b16 %v225
    %v934 = vunpack.c.l.b16 %v226
    %v935 = vunpack.c.h.b16 %v226
    %v936 = vunpack.c.l.b16 %v227
    %v937 = vunpack.c.h.b16 %v227
    %v938 = vunpack.c.l.b16 %v228
    %v939 = vunpack.c.h.b16 %v228
    %v940 = vunpack.c.l.b16 %v229
    %v941 = vunpack.c.h.b16 %v229
    %v942 = vunpack.c.l.b16 %v230
    %v943 = vunpack.c.h.b16 %v230
    %v944 = vunpack.c.l.b16 %v231
    %v945 = vunpack.c.h.b16 %v231
    %v946 = vunpack.c.l.b16 %v232
    %v947 = vunpack.c.h.b16 %v232
    %v948 = vunpack.c.l.b16 %v233
    %v949 = vunpack.c.h.b16 %v233
    %v950 = vunpack.c.l.b16 %v234
    %v951 = vunpack.c.h.b16 %v234
    %v952 = vunpack.c.l.b16 %v235
    %v953 = vunpack.c.h.b16 %v235
    %v954 = vunpack.c.l.b16 %v236
    %v955 = vunpack.c.h.b16 %v236
    %v956 = vunpack.c.l.b16 %v237
    %v957 = vunpack.c.h.b16 %v237
    %v958 = vunpack.c.l.b16 %v238
    %v959 = vunpack.c.h.b16 %v238
    %v960 = vunpack.c.l.b16 %v239
    %v961 = vunpack.c.h.b16 %v239
    %v962 = vunpack.c.l.b16 %v240
    %v963 = vunpack.c.h.b16 %v240
    %v964 = vunpack.c.l.b16 %v241
    %v965 = vunpack.c.h.b16 %v241
    %v966 = vunpack.c.l.b16 %v242
    %v967 = vunpack.c.h.b16 %v242
    %v968 = vunpack.c.l.b16 %v243
    %v969 = vunpack.c.h.b16 %v243
    %v970 = vunpack.c.l.b16 %v244
    %v971 = vunpack.c.h.b16 %v244
    %v972 = vunpack.c.l.b16 %v245
    %v973 = vunpack.c.h.b16 %v245
    %v974 = vunpack.c.l.b16 %v246
    %v975 = vunpack.c.h.b16 %v246
    %v976 = vunpack.c.l.b16 %v247
    %v977 = vunpack.c.h.b16 %v247
    %v978 = vunpack.c.l.b16 %v248
    %v979 = vunpack.c.h.b16 %v248
    %v980 = vunpack.c.l.b16 %v249
    %v981 = vunpack.c.h.b16 %v249
    %v982 = vunpack.c.l.b16 %v250
    %v983 = vunpack.c.h.b16 %v250
    %v984 = vunpack.c.l.b16 %v251
    %v985 = vunpack.c.h.b16 %v251
    %v986 = vunpack.c.l.b16 %v252
    %v987 = vunpack.c.h.b16 %v252
    %v988 = vunpack.c.l.b16 %v253
    %v989 = vunpack.c.h.b16 %v253
    %v990 = vunpack.c.l.b16 %v254
    %v991 = vunpack.c.h.b16 %v254
    %v992 = vunpack.c.l.b16 %v255
    %v993 = vunpack.c.h.b16 %v255
    %v994 = vunpack.c.l.b16 %v256
    %v995 = vunpack.c.h.b16 %v256
    %v996 = vunpack.c.l.b16 %v257
    %v997 = vunpack.c.h.b16 %v257
    %v998 = vunpack.c.l.b16 %v258
    %v999 = vunpack.c.h.b16 %v258
    %v1000 = vunpack.c.l.b16 %v259
    %v1001 = vunpack.c.h.b16 %v259
    %v1002 = vunpack.c.l.b16 %v260
    %v1003 = vunpack.c.h.b16 %v260
    %v1004 = vunpack.c.l.b16 %v261
    %v1005 = vunpack.c.h.b16 %v261
    %v1006 = vunpack.c.l.b16 %v262
    %v1007 = vunpack.c.h.b16 %v262
    %v1008 = vunpack.c.l.b16 %v263
    %v1009 = vunpack.c.h.b16 %v263
    %v1010 = vunpack.c.l.b16 %v264
    %v1011 = vunpack.c.h.b16 %v264
    %v1012 = vunpack.c.l.b16 %v265
    %v1013 = vunpack.c.h.b16 %v265
    %v1014 = vunpack.c.l.b16 %v266
    %v1015 = vunpack.c.h.b16 %v266
    %v1016 = vunpack.c.l.b16 %v267
    %v1017 = vunpack.c.h.b16 %v267
    %v1018 = vunpack.c.l.b16 %v268
    %v1019 = vunpack.c.h.b16 %v268
    %v1020 = vunpack.c.l.b16 %v269
    %v1021 = vunpack.c.h.b16 %v269
    %v1022 = vunpack.c.l.b16 %v270
    %v1023 = vunpack.c.h.b16 %v270
    %v1024 = vunpack.c.l.b16 %v271
    %v1025 = vunpack.c.h.b16 %v271
    %v1026 = vunpack.c.l.b16 %v272
    %v1027 = vunpack.c.h.b16 %v272
    %v1028 = vunpack.c.l.b16 %v273
    %v1029 = vunpack.c.h.b16 %v273
    %v1030 = vunpack.c.l.b16 %v274
    %v1031 = vunpack.c.h.b16 %v274
    %v1032 = vunpack.c.l.b16 %v275
    %v1033 = vunpack.c.h.b16 %v275
    %v1034 = vunpack.c.l.b16 %v276
    %v1035 = vunpack.c.h.b16 %v276
    %v1036 = vunpack.c.l.b16 %v277
    %v1037 = vunpack.c.h.b16 %v277
    %v1038 = vunpack.c.l.b16 %v278
    %v1039 = vunpack.c.h.b16 %v278
    %v1040 = vunpack.c.l.b16 %v279
    %v1041 = vunpack.c.h.b16 %v279
    %v1042 = vunpack.c.l.b16 %v280
    %v1043 = vunpack.c.h.b16 %v280
    %v1044 = vunpack.c.l.b16 %v281
    %v1045 = vunpack.c.h.b16 %v281
    %v1046 = vunpack.c.l.b16 %v282
    %v1047 = vunpack.c.h.b16 %v282
    %v1048 = vunpack.c.l.b16 %v283
    %v1049 = vunpack.c.h.b16 %v283
    %v1050 = vunpack.c.l.b16 %v284
    %v1051 = vunpack.c.h.b16 %v284
    %v1052 = vunpack.c.l.b16 %v285
    %v1053 = vunpack.c.h.b16 %v285
    %v1054 = vunpack.c.l.b16 %v286
    %v1055 = vunpack.c.h.b16 %v286
    %v1056 = vunpack.c.l.b16 %v287
    %v1057 = vunpack.c.h.b16 %v287
    %v1058 = vunpack.c.l.b16 %v288
    %v1059 = vunpack.c.h.b16 %v288
    %v1060 = vunpack.c.l.b16 %v289
    %v1061 = vunpack.c.h.b16 %v289
    %v1062 = vunpack.c.l.b16 %v290
    %v1063 = vunpack.c.h.b16 %v290
    %v1064 = vunpack.c.l.b16 %v291
    %v1065 = vunpack.c.h.b16 %v291
    %v1066 = vunpack.c.l.b16 %v292
    %v1067 = vunpack.c.h.b16 %v292
    %v1068 = vunpack.c.l.b16 %v293
    %v1069 = vunpack.c.h.b16 %v293
    %v1070 = vunpack.c.l.b16 %v294
    %v1071 = vunpack.c.h.b16 %v294
    %v1072 = vunpack.c.l.b16 %v295
    %v1073 = vunpack.c.h.b16 %v295
    %v1074 = vunpack.c.l.b16 %v296
    %v1075 = vunpack.c.h.b16 %v296
    %v1076 = vunpack.c.l.b16 %v297
    %v1077 = vunpack.c.h.b16 %v297
    %v1078 = vunpack.c.l.b16 %v298
    %v1079 = vunpack.c.h.b16 %v298
    %v1080 = vunpack.c.l.b16 %v299
    %v1081 = vunpack.c.h.b16 %v299
    %v1082 = vunpack.c.l.b16 %v300
    %v1083 = vunpack.c.h.b16 %v300
    %v1084 = vunpack.c.l.b16 %v301
    %v1085 = vunpack.c.h.b16 %v301
    %v1086 = vunpack.c.l.b16 %v302
    %v1087 = vunpack.c.h.b16 %v302
    %v1088 = vunpack.c.l.b16 %v303
    %v1089 = vunpack.c.h.b16 %v303
    %v1090 = vunpack.c.l.b16 %v304
    %v1091 = vunpack.c.h.b16 %v304
    %v1092 = vunpack.c.l.b16 %v305
    %v1093 = vunpack.c.h.b16 %v305
    %v1094 = vunpack.c.l.b16 %v306
    %v1095 = vunpack.c.h.b16 %v306
    %v1096 = vunpack.c.l.b16 %v307
    %v1097 = vunpack.c.h.b16 %v307
    %v1098 = vunpack.c.l.b16 %v308
    %v1099 = vunpack.c.h.b16 %v308
    %v1100 = vunpack.c.l.b16 %v309
    %v1101 = vunpack.c.h.b16 %v309
    %v1102 = vunpack.c.l.b16 %v310
    %v1103 = vunpack.c.h.b16 %v310
    %v1104 = vunpack.c.l.b16 %v311
    %v1105 = vunpack.c.h.b16 %v311
    %v1106 = vunpack.c.l.b16 %v312
    %v1107 = vunpack.c.h.b16 %v312
    %v1108 = vunpack.c.l.b16 %v313
    %v1109 = vunpack.c.h.b16 %v313
    %v1110 = vunpack.c.l.b16 %v314
    %v1111 = vunpack.c.h.b16 %v314
    %v1112 = vunpack.c.l.b16 %v315
    %v1113 = vunpack.c.h.b16 %v315
    %v1114 = vunpack.c.l.b16 %v316
    %v1115 = vunpack.c.h.b16 %v316
    %v1116 = vunpack.c.l.b16 %v317
    %v1117 = vunpack.c.h.b16 %v317
    %v1118 = vunpack.c.l.b16 %v318
    %v1119 = vunpack.c.h.b16 %v318
    %v1120 = vunpack.c.l.b16 %v319
    %v1121 = vunpack.c.h.b16 %v319
    %v1122 = vunpack.c.l.b16 %v320
    %v1123 = vunpack.c.h.b16 %v320
    %v1124 = vunpack.c.l.b16 %v321
    %v1125 = vunpack.c.h.b16 %v321
    %v1126 = vunpack.c.l.b16 %v322
    %v1127 = vunpack.c.h.b16 %v322
    %v1128 = vunpack.c.l.b16 %v323
    %v1129 = vunpack.c.h.b16 %v323
    %v1130 = vunpack.c.l.b16 %v324
    %v1131 = vunpack.c.h.b16 %v324
    %v1132 = vunpack.c.l.b16 %v325
    %v1133 = vunpack.c.h.b16 %v325
    %v1134 = vunpack.c.l.b16 %v326
    %v1135 = vunpack.c.h.b16 %v326
    %v1136 = vunpack.c.l.b16 %v327
    %v1137 = vunpack.c.h.b16 %v327
    %v1138 = vunpack.c.l.b16 %v328
    %v1139 = vunpack.c.h.b16 %v328
    %v1140 = vunpack.c.l.b16 %v329
    %v1141 = vunpack.c.h.b16 %v329
    %v1142 = vunpack.c.l.b16 %v330
    %v1143 = vunpack.c.h.b16 %v330
    %v1144 = vunpack.c.l.b16 %v331
    %v1145 = vunpack.c.h.b16 %v331
    %v1146 = vunpack.c.l.b16 %v332
    %v1147 = vunpack.c.h.b16 %v332
    %v1148 = vunpack.c.l.b16 %v333
    %v1149 = vunpack.c.h.b16 %v333
    %v1150 = vunpack.c.l.b16 %v334
    %v1151 = vunpack.c.h.b16 %v334
    %v1152 = vunpack.c.l.b16 %v335
    %v1153 = vunpack.c.h.b16 %v335
    %v1154 = vunpack.c.l.b16 %v336
    %v1155 = vunpack.c.h.b16 %v336
    %v1156 = vunpack.c.l.b16 %v337
    %v1157 = vunpack.c.h.b16 %v337
    %v1158 = vunpack.c.l.b16 %v338
    %v1159 = vunpack.c.h.b16 %v338
    %v1160 = vunpack.c.l.b16 %v339
    %v1161 = vunpack.c.h.b16 %v339
    %v1162 = vunpack.c.l.b16 %v340
    %v1163 = vunpack.c.h.b16 %v340
    %v1164 = vunpack.c.l.b16 %v341
    %v1165 = vunpack.c.h.b16 %v341
    %v1166 = vunpack.c.l.b16 %v342
    %v1167 = vunpack.c.h.b16 %v342
    %v1168 = vunpack.c.l.b16 %v343
    %v1169 = vunpack.c.h.b16 %v343
    %v1170 = vunpack.c.l.b16 %v344
    %v1171 = vunpack.c.h.b16 %v344
    %v1172 = vunpack.c.l.b16 %v345
    %v1173 = vunpack.c.h.b16 %v345
    %v1174 = vunpack.c.l.b16 %v346
    %v1175 = vunpack.c.h.b16 %v346
    %v1176 = vunpack.c.l.b16 %v347
    %v1177 = vunpack.c.h.b16 %v347
    %v1178 = vpack.c.b16 %v670, %v666
    %v1179 = vpack.c.b16 %v671, %v667
    %v1180 = vpack.c.b16 %v672, %v668
    %v1181 = vpack.c.b16 %v673, %v669
    %v1182 = vpack.c.b16 %v678, %v674
    %v1183 = vpack.c.b16 %v679, %v675
    %v1184 = vpack.c.b16 %v680, %v676
    %v1185 = vpack.c.b16 %v681, %v677
    %v1186 = vpack.c.b16 %v686, %v682
    %v1187 = vpack.c.b16 %v687, %v683
    %v1188 = vpack.c.b16 %v688, %v684
    %v1189 = vpack.c.b16 %v689, %v685
    %v1190 = vpack.c.b16 %v694, %v690
    %v1191 = vpack.c.b16 %v695, %v691
    %v1192 = vpack.c.b16 %v696, %v692
    %v1193 = vpack.c.b16 %v697, %v693
    %v1194 = vpack.c.b16 %v702, %v698
    %v1195 = vpack.c.b16 %v703, %v699
    %v1196 = vpack.c.b16 %v704, %v700
    %v1197 = vpack.c.b16 %v705, %v701
    %v1198 = vpack.c.b16 %v710, %v706
    %v1199 = vpack.c.b16 %v711, %v707
    %v1200 = vpack.c.b16 %v712, %v708
    %v1201 = vpack.c.b16 %v713, %v709
    %v1202 = vpack.c.b16 %v718, %v714
    %v1203 = vpack.c.b16 %v719, %v715
    %v1204 = vpack.c.b16 %v720, %v716
    %v1205 = vpack.c.b16 %v721, %v717
    %v1206 = vpack.c.b16 %v726, %v722
    %v1207 = vpack.c.b16 %v727, %v723
    %v1208 = vpack.c.b16 %v728, %v724
    %v1209 = vpack.c.b16 %v729, %v725
    %v1210 = vpack.c.b16 %v734, %v730
    %v1211 = vpack.c.b16 %v735, %v731
    %v1212 = vpack.c.b16 %v736, %v732
    %v1213 = vpack.c.b16 %v737, %v733
    %v1214 = vpack.c.b16 %v742, %v738
    %v1215 = vpack.c.b16 %v743, %v739
    %v1216 = vpack.c.b16 %v744, %v740
    %v1217 = vpack.c.b16 %v745, %v741
    %v1218 = vpack.c.b16 %v750, %v746
    %v1219 = vpack.c.b16 %v751, %v747
    %v1220 = vpack.c.b16 %v752, %v748
    %v1221 = vpack.c.b16 %v753, %v749
    %v1222 = vpack.c.b16 %v758, %v754
    %v1223 = vpack.c.b16 %v759, %v755
    %v1224 = vpack.c.b16 %v760, %v756
    %v1225 = vpack.c.b16 %v761, %v757
    %v1226 = vpack.c.b16 %v766, %v762
    %v1227 = vpack.c.b16 %v767, %v763
    %v1228 = vpack.c.b16 %v768, %v764
    %v1229 = vpack.c.b16 %v769, %v765
    %v1230 = vpack.c.b16 %v774, %v770
    %v1231 = vpack.c.b16 %v775, %v771
    %v1232 = vpack.c.b16 %v776, %v772
    %v1233 = vpack.c.b16 %v777, %v773
    %v1234 = vpack.c.b16 %v782, %v778
    %v1235 = vpack.c.b16 %v783, %v779
    %v1236 = vpack.c.b16 %v784, %v780
    %v1237 = vpack.c.b16 %v785, %v781
    %v1238 = vpack.c.b16 %v790, %v786
    %v1239 = vpack.c.b16 %v791, %v787
    %v1240 = vpack.c.b16 %v792, %v788
    %v1241 = vpack.c.b16 %v793, %v789
    %v1242 = vpack.c.b16 %v798, %v794
    %v1243 = vpack.c.b16 %v799, %v795
    %v1244 = vpack.c.b16 %v800, %v796
    %v1245 = vpack.c.b16 %v801, %v797
    %v1246 = vpack.c.b16 %v806, %v802
    %v1247 = vpack.c.b16 %v807, %v803
    %v1248 = vpack.c.b16 %v808, %v804
    %v1249 = vpack.c.b16 %v809, %v805
    %v1250 = vpack.c.b16 %v814, %v810
    %v1251 = vpack.c.b16 %v815, %v811
    %v1252 = vpack.c.b16 %v816, %v812
    %v1253 = vpack.c.b16 %v817, %v813
    %v1254 = vpack.c.b16 %v822, %v818
    %v1255 = vpack.c.b16 %v823, %v819
    %v1256 = vpack.c.b16 %v824, %v820
    %v1257 = vpack.c.b16 %v825, %v821
    %v1258 = vpack.c.b16 %v830, %v826
    %v1259 = vpack.c.b16 %v831, %v827
    %v1260 = vpack.c.b16 %v832, %v828
    %v1261 = vpack.c.b16 %v833, %v829
    %v1262 = vpack.c.b16 %v838, %v834
    %v1263 = vpack.c.b16 %v839, %v835
    %v1264 = vpack.c.b16 %v840, %v836
    %v1265 = vpack.c.b16 %v841, %v837
    %v1266 = vpack.c.b16 %v846, %v842
    %v1267 = vpack.c.b16 %v847, %v843
    %v1268 = vpack.c.b16 %v848, %v844
    %v1269 = vpack.c.b16 %v849, %v845
    %v1270 = vpack.c.b16 %v854, %v850
    %v1271 = vpack.c.b16 %v855, %v851
    %v1272 = vpack.c.b16 %v856, %v852
    %v1273 = vpack.c.b16 %v857, %v853
    %v1274 = vpack.c.b16 %v862, %v858
    %v1275 = vpack.c.b16 %v863, %v859
    %v1276 = vpack.c.b16 %v864, %v860
    %v1277 = vpack.c.b16 %v865, %v861
    %v1278 = vpack.c.b16 %v870, %v866
    %v1279 = vpack.c.b16 %v871, %v867
    %v1280 = vpack.c.b16 %v872, %v868
    %v1281 = vpack.c.b16 %v873, %v869
    %v1282 = vpack.c.b16 %v878, %v874
    %v1283 = vpack.c.b16 %v879, %v875
    %v1284 = vpack.c.b16 %v880, %v876
    %v1285 = vpack.c.b16 %v881, %v877
    %v1286 = vpack.c.b16 %v886, %v882
    %v1287 = vpack.c.b16 %v887, %v883
    %v1288 = vpack.c.b16 %v888, %v884
    %v1289 = vpack.c.b16 %v889, %v885
    %v1290 = vpack.c.b16 %v894, %v890
    %v1291 = vpack.c.b16 %v895, %v891
    %v1292 = vpack.c.b16 %v896, %v892
    %v1293 = vpack.c.b16 %v897, %v893
    %v1294 = vpack.c.b16 %v902, %v898
    %v1295 = vpack.c.b16 %v903, %v899
    %v1296 = vpack.c.b16 %v904, %v900
    %v1297 = vpack.c.b16 %v905, %v901
    %v1298 = vpack.c.b16 %v910, %v906
    %v1299 = vpack.c.b16 %v911, %v907
    %v1300 = vpack.c.b16 %v912, %v908
    %v1301 = vpack.c.b16 %v913, %v909
    %v1302 = vpack.c.b16 %v918, %v914
    %v1303 = vpack.c.b16 %v919, %v915
    %v1304 = vpack.c.b16 %v920, %v916
    %v1305 = vpack.c.b16 %v921, %v917
    %v1306 = vpack.c.b16 %v926, %v922
    %v1307 = vpack.c.b16 %v927, %v923
    %v1308 = vpack.c.b16 %v928, %v924
    %v1309 = vpack.c.b16 %v929, %v925
    %v1310 = vpack.c.b16 %v934, %v930
    %v1311 = vpack.c.b16 %v935, %v931
    %v1312 = vpack.c.b16 %v936, %v932
    %v1313 = vpack.c.b16 %v937, %v933
    %v1314 = vpack.c.b16 %v942, %v938
    %v1315 = vpack.c.b16 %v943, %v939
    %v1316 = vpack.c.b16 %v944, %v940
    %v1317 = vpack.c.b16 %v945, %v941
    %v1318 = vpack.c.b16 %v950, %v946
    %v1319 = vpack.c.b16 %v951, %v947
    %v1320 = vpack.c.b16 %v952, %v948
    %v1321 = vpack.c.b16 %v953, %v949
    %v1322 = vpack.c.b16 %v958, %v954
    %v1323 = vpack.c.b16 %v959, %v955
    %v1324 = vpack.c.b16 %v960, %v956
    %v1325 = vpack.c.b16 %v961, %v957
    %v1326 = vpack.c.b16 %v966, %v962
    %v1327 = vpack.c.b16 %v967, %v963
    %v1328 = vpack.c.b16 %v968, %v964
    %v1329 = vpack.c.b16 %v969, %v965
    %v1330 = vpack.c.b16 %v974, %v970
    %v1331 = vpack.c.b16 %v975, %v971
    %v1332 = vpack.c.b16 %v976, %v972
    %v1333 = vpack.c.b16 %v977, %v973
    %v1334 = vpack.c.b16 %v982, %v978
    %v1335 = vpack.c.b16 %v983, %v979
    %v1336 = vpack.c.b16 %v984, %v980
    %v1337 = vpack.c.b16 %v985, %v981
    %v1338 = vpack.c.b16 %v990, %v986
    %v1339 = vpack.c.b16 %v991, %v987
    %v1340 = vpack.c.b16 %v992, %v988
    %v1341 = vpack.c.b16 %v993, %v989
    %v1342 = vpack.c.b16 %v998, %v994
    %v1343 = vpack.c.b16 %v999, %v995
    %v1344 = vpack.c.b16 %v1000, %v996
    %v1345 = vpack.c.b16 %v1001, %v997
    %v1346 = vpack.c.b16 %v1006, %v1002
    %v1347 = vpack.c.b16 %v1007, %v1003
    %v1348 = vpack.c.b16 %v1008, %v1004
    %v1349 = vpack.c.b16 %v1009, %v1005
    %v1350 = vpack.c.b16 %v1014, %v1010
    %v1351 = vpack.c.b16 %v1015, %v1011
    %v1352 = vpack.c.b16 %v1016, %v1012
    %v1353 = vpack.c.b16 %v1017, %v1013
    %v1354 = vpack.c.b16 %v1022, %v1018
    %v1355 = vpack.c.b16 %v1023, %v1019
    %v1356 = vpack.c.b16 %v1024, %v1020
    %v1357 = vpack.c.b16 %v1025, %v1021
    %v1358 = vpack.c.b16 %v1030, %v1026
    %v1359 = vpack.c.b16 %v1031, %v1027
    %v1360 = vpack.c.b16 %v1032, %v1028
    %v1361 = vpack.c.b16 %v1033, %v1029
    %v1362 = vpack.c.b16 %v1038, %v1034
    %v1363 = vpack.c.b16 %v1039, %v1035
    %v1364 = vpack.c.b16 %v1040, %v1036
    %v1365 = vpack.c.b16 %v1041, %v1037
    %v1366 = vpack.c.b16 %v1046, %v1042
    %v1367 = vpack.c.b16 %v1047, %v1043
    %v1368 = vpack.c.b16 %v1048, %v1044
    %v1369 = vpack.c.b16 %v1049, %v1045
    %v1370 = vpack.c.b16 %v1054, %v1050
    %v1371 = vpack.c.b16 %v1055, %v1051
    %v1372 = vpack.c.b16 %v1056, %v1052
    %v1373 = vpack.c.b16 %v1057, %v1053
    %v1374 = vpack.c.b16 %v1062, %v1058
    %v1375 = vpack.c.b16 %v1063, %v1059
    %v1376 = vpack.c.b16 %v1064, %v1060
    %v1377 = vpack.c.b16 %v1065, %v1061
    %v1378 = vpack.c.b16 %v1070, %v1066
    %v1379 = vpack.c.b16 %v1071, %v1067
    %v1380 = vpack.c.b16 %v1072, %v1068
    %v1381 = vpack.c.b16 %v1073, %v1069
    %v1382 = vpack.c.b16 %v1078, %v1074
    %v1383 = vpack.c.b16 %v1079, %v1075
    %v1384 = vpack.c.b16 %v1080, %v1076
    %v1385 = vpack.c.b16 %v1081, %v1077
    %v1386 = vpack.c.b16 %v1086, %v1082
    %v1387 = vpack.c.b16 %v1087, %v1083
    %v1388 = vpack.c.b16 %v1088, %v1084
    %v1389 = vpack.c.b16 %v1089, %v1085
    %v1390 = vpack.c.b16 %v1094, %v1090
    %v1391 = vpack.c.b16 %v1095, %v1091
    %v1392 = vpack.c.b16 %v1096, %v1092
    %v1393 = vpack.c.b16 %v1097, %v1093
    %v1394 = vpack.c.b16 %v1102, %v1098
    %v1395 = vpack.c.b16 %v1103, %v1099
    %v1396 = vpack.c.b16 %v1104, %v1100
    %v1397 = vpack.c.b16 %v1105, %v1101
    %v1398 = vpack.c.b16 %v1110, %v1106
    %v1399 = vpack.c.b16 %v1111, %v1107
    %v1400 = vpack.c.b16 %v1112, %v1108
    %v1401 = vpack.c.b16 %v1113, %v1109
    %v1402 = vpack.c.b16 %v1118, %v1114
    %v1403 = vpack.c.b16 %v1119, %v1115
    %v1404 = vpack.c.b16 %v1120, %v1116
    %v1405 = vpack.c.b16 %v1121, %v1117
    %v1406 = vpack.c.b16 %v1126, %v1122
    %v1407 = vpack.c.b16 %v1127, %v1123
    %v1408 = vpack.c.b16 %v1128, %v1124
    %v1409 = vpack.c.b16 %v1129, %v1125
    %v1410 = vpack.c.b16 %v1134, %v1130
    %v1411 = vpack.c.b16 %v1135, %v1131
    %v1412 = vpack.c.b16 %v1136, %v1132
    %v1413 = vpack.c.b16 %v1137, %v1133
    %v1414 = vpack.c.b16 %v1142, %v1138
    %v1415 = vpack.c.b16 %v1143, %v1139
    %v1416 = vpack.c.b16 %v1144, %v1140
    %v1417 = vpack.c.b16 %v1145, %v1141
    %v1418 = vpack.c.b16 %v1150, %v1146
    %v1419 = vpack.c.b16 %v1151, %v1147
    %v1420 = vpack.c.b16 %v1152, %v1148
    %v1421 = vpack.c.b16 %v1153, %v1149
    %v1422 = vpack.c.b16 %v1158, %v1154
    %v1423 = vpack.c.b16 %v1159, %v1155
    %v1424 = vpack.c.b16 %v1160, %v1156
    %v1425 = vpack.c.b16 %v1161, %v1157
    %v1426 = vpack.c.b16 %v1166, %v1162
    %v1427 = vpack.c.b16 %v1167, %v1163
    %v1428 = vpack.c.b16 %v1168, %v1164
    %v1429 = vpack.c.b16 %v1169, %v1165
    %v1430 = vpack.c.b16 %v1174, %v1170
    %v1431 = vpack.c.b16 %v1175, %v1171
    %v1432 = vpack.c.b16 %v1176, %v1172
    %v1433 = vpack.c.b16 %v1177, %v1173
    %1690 = vmatprep.subr.bf16.mxu0 %v1179
    %1691 = vmatpush1.bf16.msra.mxu0 %v1178
    %1692 = vmatprep.subr.bf16.mxu0 %v1183
    %1693 = vmatpush1.bf16.msra.mxu0 %v1182
    %1694 = vmatprep.subr.bf16.mxu0 %v1187
    %1695 = vmatpush1.bf16.msra.mxu0 %v1186
    %1696 = vmatprep.subr.bf16.mxu0 %v1191
    %1697 = vmatpush1.bf16.msra.mxu0 %v1190
    %1698 = vmatprep.subr.bf16.mxu0 %v1195
    %1699 = vmatpush1.bf16.msra.mxu0 %v1194
    %1700 = vmatprep.subr.bf16.mxu0 %v1199
    %1701 = vmatpush1.bf16.msra.mxu0 %v1198
    %1702 = vmatprep.subr.bf16.mxu0 %v1203
    %1703 = vmatpush1.bf16.msra.mxu0 %v1202
    %1704 = vmatprep.subr.bf16.mxu0 %v1207
    %1705 = vmatpush1.bf16.msra.mxu0 %v1206
    %1706 = vmatprep.subr.bf16.mxu0 %v1211
    %1707 = vmatpush1.bf16.msra.mxu0 %v1210
    %1708 = vmatprep.subr.bf16.mxu0 %v1215
    %1709 = vmatpush1.bf16.msra.mxu0 %v1214
    %1710 = vmatprep.subr.bf16.mxu0 %v1219
    %1711 = vmatpush1.bf16.msra.mxu0 %v1218
    %1712 = vmatprep.subr.bf16.mxu0 %v1223
    %1713 = vmatpush1.bf16.msra.mxu0 %v1222
    %1714 = vmatprep.subr.bf16.mxu0 %v1227
    %1715 = vmatpush1.bf16.msra.mxu0 %v1226
    %1716 = vmatprep.subr.bf16.mxu0 %v1231
    %1717 = vmatpush1.bf16.msra.mxu0 %v1230
    %1718 = vmatprep.subr.bf16.mxu0 %v1235
    %1719 = vmatpush1.bf16.msra.mxu0 %v1234
    %1720 = vmatprep.subr.bf16.mxu0 %v1239
    %1721 = vmatpush1.bf16.msra.mxu0 %v1238
    %1722 = vmatprep.mubr.bf16.mxu0 %v395
    %1723 = vmatmul.mubr.bf16.gmra.mrb[0].mxu0 %v394
    %v1724 = vpop.f32.mrb[0].mxu0
    %v1725 = vadd.f32 %v353, %v1724
    %v1726 = vpop.f32.mrb[0].mxu0
    %v1727 = vadd.f32 %v357, %v1726
    %v1728 = vpop.f32.mrb[0].mxu0
    %v1729 = vadd.f32 %v353, %v1728
    %v1730 = vpop.f32.mrb[0].mxu0
    %v1731 = vadd.f32 %v357, %v1730
    %1732 = vdwg.mxu0
    %1733 = vmatprep.subr.bf16.mxu0 %v1243
    %1734 = vmatpush1.bf16.msra.mxu0 %v1242
    %1735 = vmatprep.subr.bf16.mxu0 %v1247
    %1736 = vmatpush1.bf16.msra.mxu0 %v1246
    %1737 = vmatprep.subr.bf16.mxu0 %v1251
    %1738 = vmatpush1.bf16.msra.mxu0 %v1250
    %1739 = vmatprep.subr.bf16.mxu0 %v1255
    %1740 = vmatpush1.bf16.msra.mxu0 %v1254
    %1741 = vmatprep.subr.bf16.mxu0 %v1259
    %1742 = vmatpush1.bf16.msra.mxu0 %v1258
    %1743 = vmatprep.subr.bf16.mxu0 %v1263
    %1744 = vmatpush1.bf16.msra.mxu0 %v1262
    %1745 = vmatprep.subr.bf16.mxu0 %v1267
    %1746 = vmatpush1.bf16.msra.mxu0 %v1266
    %1747 = vmatprep.subr.bf16.mxu0 %v1271
    %1748 = vmatpush1.bf16.msra.mxu0 %v1270
    %1749 = vmatprep.subr.bf16.mxu0 %v1275
    %1750 = vmatpush1.bf16.msra.mxu0 %v1274
    %1751 = vmatprep.subr.bf16.mxu0 %v1279
    %1752 = vmatpush1.bf16.msra.mxu0 %v1278
    %1753 = vmatprep.subr.bf16.mxu0 %v1283
    %1754 = vmatpush1.bf16.msra.mxu0 %v1282
    %1755 = vmatprep.subr.bf16.mxu0 %v1287
    %1756 = vmatpush1.bf16.msra.mxu0 %v1286
    %1757 = vmatprep.subr.bf16.mxu0 %v1291
    %1758 = vmatpush1.bf16.msra.mxu0 %v1290
    %1759 = vmatprep.subr.bf16.mxu0 %v1295
    %1760 = vmatpush1.bf16.msra.mxu0 %v1294
    %1761 = vmatprep.subr.bf16.mxu0 %v1299
    %1762 = vmatpush1.bf16.msra.mxu0 %v1298
    %1763 = vmatprep.subr.bf16.mxu0 %v1303
    %1764 = vmatpush1.bf16.msra.mxu0 %v1302
    %1765 = vmatprep.mubr.bf16.mxu0 %v397
    %1766 = vmatmul.mubr.bf16.gmra.mrb[0].mxu0 %v396
    %v1767 = vpop.f32.mrb[0].mxu0
    %v1768 = vadd.f32 %v1725, %v1767
    %v1769 = vpop.f32.mrb[0].mxu0
    %v1770 = vadd.f32 %v1727, %v1769
    %v1771 = vpop.f32.mrb[0].mxu0
    %v1772 = vadd.f32 %v1729, %v1771
    %v1773 = vpop.f32.mrb[0].mxu0
    %v1774 = vadd.f32 %v1731, %v1773
    %1775 = vdwg.mxu0
    %1776 = vmatprep.subr.bf16.mxu0 %v1307
    %1777 = vmatpush1.bf16.msra.mxu0 %v1306
    %1778 = vmatprep.subr.bf16.mxu0 %v1311
    %1779 = vmatpush1.bf16.msra.mxu0 %v1310
    %1780 = vmatprep.subr.bf16.mxu0 %v1315
    %1781 = vmatpush1.bf16.msra.mxu0 %v1314
    %1782 = vmatprep.subr.bf16.mxu0 %v1319
    %1783 = vmatpush1.bf16.msra.mxu0 %v1318
    %1784 = vmatprep.subr.bf16.mxu0 %v1323
    %1785 = vmatpush1.bf16.msra.mxu0 %v1322
    %1786 = vmatprep.subr.bf16.mxu0 %v1327
    %1787 = vmatpush1.bf16.msra.mxu0 %v1326
    %1788 = vmatprep.subr.bf16.mxu0 %v1331
    %1789 = vmatpush1.bf16.msra.mxu0 %v1330
    %1790 = vmatprep.subr.bf16.mxu0 %v1335
    %1791 = vmatpush1.bf16.msra.mxu0 %v1334
    %1792 = vmatprep.subr.bf16.mxu0 %v1339
    %1793 = vmatpush1.bf16.msra.mxu0 %v1338
    %1794 = vmatprep.subr.bf16.mxu0 %v1343
    %1795 = vmatpush1.bf16.msra.mxu0 %v1342
    %1796 = vmatprep.subr.bf16.mxu0 %v1347
    %1797 = vmatpush1.bf16.msra.mxu0 %v1346
    %1798 = vmatprep.subr.bf16.mxu0 %v1351
    %1799 = vmatpush1.bf16.msra.mxu0 %v1350
    %1800 = vmatprep.subr.bf16.mxu0 %v1355
    %1801 = vmatpush1.bf16.msra.mxu0 %v1354
    %1802 = vmatprep.subr.bf16.mxu0 %v1359
    %1803 = vmatpush1.bf16.msra.mxu0 %v1358
    %1804 = vmatprep.subr.bf16.mxu0 %v1363
    %1805 = vmatpush1.bf16.msra.mxu0 %v1362
    %1806 = vmatprep.subr.bf16.mxu0 %v1367
    %1807 = vmatpush1.bf16.msra.mxu0 %v1366
    %1808 = vmatprep.mubr.bf16.mxu0 %v399
    %1809 = vmatmul.mubr.bf16.gmra.mrb[0].mxu0 %v398
    %v1810 = vpop.f32.mrb[0].mxu0
    %v1811 = vadd.f32 %v1768, %v1810
    %v1812 = vpop.f32.mrb[0].mxu0
    %v1813 = vadd.f32 %v1770, %v1812
    %v1814 = vpop.f32.mrb[0].mxu0
    %v1815 = vadd.f32 %v1772, %v1814
    %v1816 = vpop.f32.mrb[0].mxu0
    %v1817 = vadd.f32 %v1774, %v1816
    %1818 = vdwg.mxu0
    %1819 = vmatprep.subr.bf16.mxu0 %v1371
    %1820 = vmatpush1.bf16.msra.mxu0 %v1370
    %1821 = vmatprep.subr.bf16.mxu0 %v1375
    %1822 = vmatpush1.bf16.msra.mxu0 %v1374
    %1823 = vmatprep.subr.bf16.mxu0 %v1379
    %1824 = vmatpush1.bf16.msra.mxu0 %v1378
    %1825 = vmatprep.subr.bf16.mxu0 %v1383
    %1826 = vmatpush1.bf16.msra.mxu0 %v1382
    %1827 = vmatprep.subr.bf16.mxu0 %v1387
    %1828 = vmatpush1.bf16.msra.mxu0 %v1386
    %1829 = vmatprep.subr.bf16.mxu0 %v1391
    %1830 = vmatpush1.bf16.msra.mxu0 %v1390
    %1831 = vmatprep.subr.bf16.mxu0 %v1395
    %1832 = vmatpush1.bf16.msra.mxu0 %v1394
    %1833 = vmatprep.subr.bf16.mxu0 %v1399
    %1834 = vmatpush1.bf16.msra.mxu0 %v1398
    %1835 = vmatprep.subr.bf16.mxu0 %v1403
    %1836 = vmatpush1.bf16.msra.mxu0 %v1402
    %1837 = vmatprep.subr.bf16.mxu0 %v1407
    %1838 = vmatpush1.bf16.msra.mxu0 %v1406
    %1839 = vmatprep.subr.bf16.mxu0 %v1411
    %1840 = vmatpush1.bf16.msra.mxu0 %v1410
    %1841 = vmatprep.subr.bf16.mxu0 %v1415
    %1842 = vmatpush1.bf16.msra.mxu0 %v1414
    %1843 = vmatprep.subr.bf16.mxu0 %v1419
    %1844 = vmatpush1.bf16.msra.mxu0 %v1418
    %1845 = vmatprep.subr.bf16.mxu0 %v1423
    %1846 = vmatpush1.bf16.msra.mxu0 %v1422
    %1847 = vmatprep.subr.bf16.mxu0 %v1427
    %1848 = vmatpush1.bf16.msra.mxu0 %v1426
    %1849 = vmatprep.subr.bf16.mxu0 %v1431
    %1850 = vmatpush1.bf16.msra.mxu0 %v1430
    %1851 = vmatprep.mubr.bf16.mxu0 %v401
    %1852 = vmatmul.mubr.bf16.gmra.mrb[0].mxu0 %v400
    %v1853 = vpop.f32.mrb[0].mxu0
    %v1854 = vadd.f32 %v1811, %v1853
    %v1855 = vpop.f32.mrb[0].mxu0
    %v1856 = vadd.f32 %v1813, %v1855
    %v1857 = vpop.f32.mrb[0].mxu0
    %v1858 = vadd.f32 %v1815, %v1857
    %v1859 = vpop.f32.mrb[0].mxu0
    %v1860 = vadd.f32 %v1817, %v1859
    %1861 = vdwg.mxu0
    %1862 = vmatprep.subr.bf16.mxu0 %v1181
    %1863 = vmatpush1.bf16.msra.mxu0 %v1180
    %1864 = vmatprep.subr.bf16.mxu0 %v1185
    %1865 = vmatpush1.bf16.msra.mxu0 %v1184
    %1866 = vmatprep.subr.bf16.mxu0 %v1189
    %1867 = vmatpush1.bf16.msra.mxu0 %v1188
    %1868 = vmatprep.subr.bf16.mxu0 %v1193
    %1869 = vmatpush1.bf16.msra.mxu0 %v1192
    %1870 = vmatprep.subr.bf16.mxu0 %v1197
    %1871 = vmatpush1.bf16.msra.mxu0 %v1196
    %1872 = vmatprep.subr.bf16.mxu0 %v1201
    %1873 = vmatpush1.bf16.msra.mxu0 %v1200
    %1874 = vmatprep.subr.bf16.mxu0 %v1205
    %1875 = vmatpush1.bf16.msra.mxu0 %v1204
    %1876 = vmatprep.subr.bf16.mxu0 %v1209
    %1877 = vmatpush1.bf16.msra.mxu0 %v1208
    %1878 = vmatprep.subr.bf16.mxu0 %v1213
    %1879 = vmatpush1.bf16.msra.mxu0 %v1212
    %1880 = vmatprep.subr.bf16.mxu0 %v1217
    %1881 = vmatpush1.bf16.msra.mxu0 %v1216
    %1882 = vmatprep.subr.bf16.mxu0 %v1221
    %1883 = vmatpush1.bf16.msra.mxu0 %v1220
    %1884 = vmatprep.subr.bf16.mxu0 %v1225
    %1885 = vmatpush1.bf16.msra.mxu0 %v1224
    %1886 = vmatprep.subr.bf16.mxu0 %v1229
    %1887 = vmatpush1.bf16.msra.mxu0 %v1228
    %1888 = vmatprep.subr.bf16.mxu0 %v1233
    %1889 = vmatpush1.bf16.msra.mxu0 %v1232
    %1890 = vmatprep.subr.bf16.mxu0 %v1237
    %1891 = vmatpush1.bf16.msra.mxu0 %v1236
    %1892 = vmatprep.subr.bf16.mxu0 %v1241
    %1893 = vmatpush1.bf16.msra.mxu0 %v1240
    %1894 = vmatprep.mubr.bf16.mxu0 %v395
    %1895 = vmatmul.mubr.bf16.gmra.mrb[0].mxu0 %v394
    %v1896 = vpop.f32.mrb[0].mxu0
    %v1897 = vadd.f32 %v361, %v1896
    %v1898 = vpop.f32.mrb[0].mxu0
    %v1899 = vadd.f32 %v365, %v1898
    %v1900 = vpop.f32.mrb[0].mxu0
    %v1901 = vadd.f32 %v361, %v1900
    %v1902 = vpop.f32.mrb[0].mxu0
    %v1903 = vadd.f32 %v365, %v1902
    %1904 = vdwg.mxu0
    %1905 = vmatprep.subr.bf16.mxu0 %v1245
    %1906 = vmatpush1.bf16.msra.mxu0 %v1244
    %1907 = vmatprep.subr.bf16.mxu0 %v1249
    %1908 = vmatpush1.bf16.msra.mxu0 %v1248
    %1909 = vmatprep.subr.bf16.mxu0 %v1253
    %1910 = vmatpush1.bf16.msra.mxu0 %v1252
    %1911 = vmatprep.subr.bf16.mxu0 %v1257
    %1912 = vmatpush1.bf16.msra.mxu0 %v1256
    %1913 = vmatprep.subr.bf16.mxu0 %v1261
    %1914 = vmatpush1.bf16.msra.mxu0 %v1260
    %1915 = vmatprep.subr.bf16.mxu0 %v1265
    %1916 = vmatpush1.bf16.msra.mxu0 %v1264
    %1917 = vmatprep.subr.bf16.mxu0 %v1269
    %1918 = vmatpush1.bf16.msra.mxu0 %v1268
    %1919 = vmatprep.subr.bf16.mxu0 %v1273
    %1920 = vmatpush1.bf16.msra.mxu0 %v1272
    %1921 = vmatprep.subr.bf16.mxu0 %v1277
    %1922 = vmatpush1.bf16.msra.mxu0 %v1276
    %1923 = vmatprep.subr.bf16.mxu0 %v1281
    %1924 = vmatpush1.bf16.msra.mxu0 %v1280
    %1925 = vmatprep.subr.bf16.mxu0 %v1285
    %1926 = vmatpush1.bf16.msra.mxu0 %v1284
    %1927 = vmatprep.subr.bf16.mxu0 %v1289
    %1928 = vmatpush1.bf16.msra.mxu0 %v1288
    %1929 = vmatprep.subr.bf16.mxu0 %v1293
    %1930 = vmatpush1.bf16.msra.mxu0 %v1292
    %1931 = vmatprep.subr.bf16.mxu0 %v1297
    %1932 = vmatpush1.bf16.msra.mxu0 %v1296
    %1933 = vmatprep.subr.bf16.mxu0 %v1301
    %1934 = vmatpush1.bf16.msra.mxu0 %v1300
    %1935 = vmatprep.subr.bf16.mxu0 %v1305
    %1936 = vmatpush1.bf16.msra.mxu0 %v1304
    %1937 = vmatprep.mubr.bf16.mxu0 %v397
    %1938 = vmatmul.mubr.bf16.gmra.mrb[0].mxu0 %v396
    %v1939 = vpop.f32.mrb[0].mxu0
    %v1940 = vadd.f32 %v1897, %v1939
    %v1941 = vpop.f32.mrb[0].mxu0
    %v1942 = vadd.f32 %v1899, %v1941
    %v1943 = vpop.f32.mrb[0].mxu0
    %v1944 = vadd.f32 %v1901, %v1943
    %v1945 = vpop.f32.mrb[0].mxu0
    %v1946 = vadd.f32 %v1903, %v1945
    %1947 = vdwg.mxu0
    %1948 = vmatprep.subr.bf16.mxu0 %v1309
    %1949 = vmatpush1.bf16.msra.mxu0 %v1308
    %1950 = vmatprep.subr.bf16.mxu0 %v1313
    %1951 = vmatpush1.bf16.msra.mxu0 %v1312
    %1952 = vmatprep.subr.bf16.mxu0 %v1317
    %1953 = vmatpush1.bf16.msra.mxu0 %v1316
    %1954 = vmatprep.subr.bf16.mxu0 %v1321
    %1955 = vmatpush1.bf16.msra.mxu0 %v1320
    %1956 = vmatprep.subr.bf16.mxu0 %v1325
    %1957 = vmatpush1.bf16.msra.mxu0 %v1324
    %1958 = vmatprep.subr.bf16.mxu0 %v1329
    %1959 = vmatpush1.bf16.msra.mxu0 %v1328
    %1960 = vmatprep.subr.bf16.mxu0 %v1333
    %1961 = vmatpush1.bf16.msra.mxu0 %v1332
    %1962 = vmatprep.subr.bf16.mxu0 %v1337
    %1963 = vmatpush1.bf16.msra.mxu0 %v1336
    %1964 = vmatprep.subr.bf16.mxu0 %v1341
    %1965 = vmatpush1.bf16.msra.mxu0 %v1340
    %1966 = vmatprep.subr.bf16.mxu0 %v1345
    %1967 = vmatpush1.bf16.msra.mxu0 %v1344
    %1968 = vmatprep.subr.bf16.mxu0 %v1349
    %1969 = vmatpush1.bf16.msra.mxu0 %v1348
    %1970 = vmatprep.subr.bf16.mxu0 %v1353
    %1971 = vmatpush1.bf16.msra.mxu0 %v1352
    %1972 = vmatprep.subr.bf16.mxu0 %v1357
    %1973 = vmatpush1.bf16.msra.mxu0 %v1356
    %1974 = vmatprep.subr.bf16.mxu0 %v1361
    %1975 = vmatpush1.bf16.msra.mxu0 %v1360
    %1976 = vmatprep.subr.bf16.mxu0 %v1365
    %1977 = vmatpush1.bf16.msra.mxu0 %v1364
    %1978 = vmatprep.subr.bf16.mxu0 %v1369
    %1979 = vmatpush1.bf16.msra.mxu0 %v1368
    %1980 = vmatprep.mubr.bf16.mxu0 %v399
    %1981 = vmatmul.mubr.bf16.gmra.mrb[0].mxu0 %v398
    %v1982 = vpop.f32.mrb[0].mxu0
    %v1983 = vadd.f32 %v1940, %v1982
    %v1984 = vpop.f32.mrb[0].mxu0
    %v1985 = vadd.f32 %v1942, %v1984
    %v1986 = vpop.f32.mrb[0].mxu0
    %v1987 = vadd.f32 %v1944, %v1986
    %v1988 = vpop.f32.mrb[0].mxu0
    %v1989 = vadd.f32 %v1946, %v1988
    %1990 = vdwg.mxu0
    %1991 = vmatprep.subr.bf16.mxu0 %v1373
    %1992 = vmatpush1.bf16.msra.mxu0 %v1372
    %1993 = vmatprep.subr.bf16.mxu0 %v1377
    %1994 = vmatpush1.bf16.msra.mxu0 %v1376
    %1995 = vmatprep.subr.bf16.mxu0 %v1381
    %1996 = vmatpush1.bf16.msra.mxu0 %v1380
    %1997 = vmatprep.subr.bf16.mxu0 %v1385
    %1998 = vmatpush1.bf16.msra.mxu0 %v1384
    %1999 = vmatprep.subr.bf16.mxu0 %v1389
    %2000 = vmatpush1.bf16.msra.mxu0 %v1388
    %2001 = vmatprep.subr.bf16.mxu0 %v1393
    %2002 = vmatpush1.bf16.msra.mxu0 %v1392
    %2003 = vmatprep.subr.bf16.mxu0 %v1397
    %2004 = vmatpush1.bf16.msra.mxu0 %v1396
    %2005 = vmatprep.subr.bf16.mxu0 %v1401
    %2006 = vmatpush1.bf16.msra.mxu0 %v1400
    %2007 = vmatprep.subr.bf16.mxu0 %v1405
    %2008 = vmatpush1.bf16.msra.mxu0 %v1404
    %2009 = vmatprep.subr.bf16.mxu0 %v1409
    %2010 = vmatpush1.bf16.msra.mxu0 %v1408
    %2011 = vmatprep.subr.bf16.mxu0 %v1413
    %2012 = vmatpush1.bf16.msra.mxu0 %v1412
    %2013 = vmatprep.subr.bf16.mxu0 %v1417
    %2014 = vmatpush1.bf16.msra.mxu0 %v1416
    %2015 = vmatprep.subr.bf16.mxu0 %v1421
    %2016 = vmatpush1.bf16.msra.mxu0 %v1420
    %2017 = vmatprep.subr.bf16.mxu0 %v1425
    %2018 = vmatpush1.bf16.msra.mxu0 %v1424
    %2019 = vmatprep.subr.bf16.mxu0 %v1429
    %2020 = vmatpush1.bf16.msra.mxu0 %v1428
    %2021 = vmatprep.subr.bf16.mxu0 %v1433
    %2022 = vmatpush1.bf16.msra.mxu0 %v1432
    %2023 = vmatprep.mubr.bf16.mxu0 %v401
    %2024 = vmatmul.mubr.bf16.gmra.mrb[0].mxu0 %v400
    %v2025 = vpop.f32.mrb[0].mxu0
    %v2026 = vadd.f32 %v1983, %v2025
    %v2027 = vpop.f32.mrb[0].mxu0
    %v2028 = vadd.f32 %v1985, %v2027
    %v2029 = vpop.f32.mrb[0].mxu0
    %v2030 = vadd.f32 %v1987, %v2029
    %v2031 = vpop.f32.mrb[0].mxu0
    %v2032 = vadd.f32 %v1989, %v2031
    %2033 = vdwg.mxu0
    %v2034 = vpack.c.bf16 %v1858, %v1854
    %v2035 = vpack.c.bf16 %v1860, %v1856
    %v2036 = vpack.c.bf16 %v2030, %v2026
    %v2037 = vpack.c.bf16 %v2032, %v2028
    %v2038 = vmax.bf16 %v2034, 0
    %v2039 = vmax.bf16 %v2035, 0
    %v2040 = vmax.bf16 %v2036, 0
    %v2041 = vmax.bf16 %v2037, 0
    %v2042 = vmin.bf16 %v2038, 1065369472
    %v2043 = vmin.bf16 %v2039, 1065369472
    %v2044 = vmin.bf16 %v2040, 1065369472
    %v2045 = vmin.bf16 %v2041, 1065369472
    %v2046 = vld [vmem:[#allocation7] sm:$0xff]
    %v2047 = vld [vmem:[#allocation7 + $0x8] sm:$0xff]
    %v2048 = vld [vmem:[#allocation7 + $0x10] sm:$0xff]
    %v2049 = vld [vmem:[#allocation7 + $0x18] sm:$0xff]
    %v2050 = vld [vmem:[#allocation7 + $0x20] sm:$0xff]
    %v2051 = vld [vmem:[#allocation7 + $0x28] sm:$0xff]
    %v2052 = vld [vmem:[#allocation7 + $0x30] sm:$0xff]
    %v2053 = vld [vmem:[#allocation7 + $0x38] sm:$0xff]
    %v2054 = vld [vmem:[#allocation7 + $0x40] sm:$0xff]
    %v2055 = vld [vmem:[#allocation7 + $0x48] sm:$0xff]
    %v2056 = vld [vmem:[#allocation7 + $0x50] sm:$0xff]
    %v2057 = vld [vmem:[#allocation7 + $0x58] sm:$0xff]
    %v2058 = vld [vmem:[#allocation7 + $0x60] sm:$0xff]
    %v2059 = vld [vmem:[#allocation7 + $0x68] sm:$0xff]
    %v2060 = vld [vmem:[#allocation7 + $0x70] sm:$0xff]
    %v2061 = vld [vmem:[#allocation7 + $0x78] sm:$0xff]
    %v2062 = vld [vmem:[#allocation7 + $0x80] sm:$0xff]
    %v2063 = vld [vmem:[#allocation7 + $0x88] sm:$0xff]
    %v2064 = vld [vmem:[#allocation7 + $0x90] sm:$0xff]
    %v2065 = vld [vmem:[#allocation7 + $0x98] sm:$0xff]
    %v2066 = vld [vmem:[#allocation7 + $0xa0] sm:$0xff]
    %v2067 = vld [vmem:[#allocation7 + $0xa8] sm:$0xff]
    %v2068 = vld [vmem:[#allocation7 + $0xb0] sm:$0xff]
    %v2069 = vld [vmem:[#allocation7 + $0xb8] sm:$0xff]
    %v2070 = vld [vmem:[#allocation7 + $0xc0] sm:$0xff]
    %v2071 = vld [vmem:[#allocation7 + $0xc8] sm:$0xff]
    %v2072 = vld [vmem:[#allocation7 + $0xd0] sm:$0xff]
    %v2073 = vld [vmem:[#allocation7 + $0xd8] sm:$0xff]
    %v2074 = vld [vmem:[#allocation7 + $0xe0] sm:$0xff]
    %v2075 = vld [vmem:[#allocation7 + $0xe8] sm:$0xff]
    %v2076 = vld [vmem:[#allocation7 + $0xf0] sm:$0xff]
    %v2077 = vld [vmem:[#allocation7 + $0xf8] sm:$0xff]
    %v2078 = vld [vmem:[#allocation7 + $0x100] sm:$0xff]
    %v2079 = vld [vmem:[#allocation7 + $0x108] sm:$0xff]
    %v2080 = vld [vmem:[#allocation7 + $0x110] sm:$0xff]
    %v2081 = vld [vmem:[#allocation7 + $0x118] sm:$0xff]
    %v2082 = vld [vmem:[#allocation7 + $0x120] sm:$0xff]
    %v2083 = vld [vmem:[#allocation7 + $0x128] sm:$0xff]
    %v2084 = vld [vmem:[#allocation7 + $0x130] sm:$0xff]
    %v2085 = vld [vmem:[#allocation7 + $0x138] sm:$0xff]
    %v2086 = vld [vmem:[#allocation7 + $0x140] sm:$0xff]
    %v2087 = vld [vmem:[#allocation7 + $0x148] sm:$0xff]
    %v2088 = vld [vmem:[#allocation7 + $0x150] sm:$0xff]
    %v2089 = vld [vmem:[#allocation7 + $0x158] sm:$0xff]
    %v2090 = vld [vmem:[#allocation7 + $0x160] sm:$0xff]
    %v2091 = vld [vmem:[#allocation7 + $0x168] sm:$0xff]
    %v2092 = vld [vmem:[#allocation7 + $0x170] sm:$0xff]
    %v2093 = vld [vmem:[#allocation7 + $0x178] sm:$0xff]
    %v2094 = vld [vmem:[#allocation7 + $0x180] sm:$0xff]
    %v2095 = vld [vmem:[#allocation7 + $0x188] sm:$0xff]
    %v2096 = vld [vmem:[#allocation7 + $0x190] sm:$0xff]
    %v2097 = vld [vmem:[#allocation7 + $0x198] sm:$0xff]
    %v2098 = vld [vmem:[#allocation7 + $0x1a0] sm:$0xff]
    %v2099 = vld [vmem:[#allocation7 + $0x1a8] sm:$0xff]
    %v2100 = vld [vmem:[#allocation7 + $0x1b0] sm:$0xff]
    %v2101 = vld [vmem:[#allocation7 + $0x1b8] sm:$0xff]
    %v2102 = vld [vmem:[#allocation7 + $0x1c0] sm:$0xff]
    %v2103 = vld [vmem:[#allocation7 + $0x1c8] sm:$0xff]
    %v2104 = vld [vmem:[#allocation7 + $0x1d0] sm:$0xff]
    %v2105 = vld [vmem:[#allocation7 + $0x1d8] sm:$0xff]
    %v2106 = vld [vmem:[#allocation7 + $0x1e0] sm:$0xff]
    %v2107 = vld [vmem:[#allocation7 + $0x1e8] sm:$0xff]
    %v2108 = vld [vmem:[#allocation7 + $0x1f0] sm:$0xff]
    %v2109 = vld [vmem:[#allocation7 + $0x1f8] sm:$0xff]
    %v2110 = vld [vmem:[%s4] sm:$0x3]
    %v2112 = vlaneseq
    %v2113 = vshrl.u32 %v2112, 7
    %v2114 = vsub.s32 0, %v2113
    %v2115 = vrot.slane %v2110, %v2114
    %v2116 = vlaneseq
    %v2117 = vshrl.u32 %v2116, 7
    %v2118 = vsub.s32 1, %v2117
    %v2119 = vrot.slane %v2110, %v2118
    %v2186 = vunpack.c.l.b16 %v2046
    %v2187 = vunpack.c.h.b16 %v2046
    %v2188 = vunpack.c.l.b16 %v2047
    %v2189 = vunpack.c.h.b16 %v2047
    %v2190 = vunpack.c.l.b16 %v2048
    %v2191 = vunpack.c.h.b16 %v2048
    %v2192 = vunpack.c.l.b16 %v2049
    %v2193 = vunpack.c.h.b16 %v2049
    %v2194 = vunpack.c.l.b16 %v2050
    %v2195 = vunpack.c.h.b16 %v2050
    %v2196 = vunpack.c.l.b16 %v2051
    %v2197 = vunpack.c.h.b16 %v2051
    %v2198 = vunpack.c.l.b16 %v2052
    %v2199 = vunpack.c.h.b16 %v2052
    %v2200 = vunpack.c.l.b16 %v2053
    %v2201 = vunpack.c.h.b16 %v2053
    %v2202 = vunpack.c.l.b16 %v2054
    %v2203 = vunpack.c.h.b16 %v2054
    %v2204 = vunpack.c.l.b16 %v2055
    %v2205 = vunpack.c.h.b16 %v2055
    %v2206 = vunpack.c.l.b16 %v2056
    %v2207 = vunpack.c.h.b16 %v2056
    %v2208 = vunpack.c.l.b16 %v2057
    %v2209 = vunpack.c.h.b16 %v2057
    %v2210 = vunpack.c.l.b16 %v2058
    %v2211 = vunpack.c.h.b16 %v2058
    %v2212 = vunpack.c.l.b16 %v2059
    %v2213 = vunpack.c.h.b16 %v2059
    %v2214 = vunpack.c.l.b16 %v2060
    %v2215 = vunpack.c.h.b16 %v2060
    %v2216 = vunpack.c.l.b16 %v2061
    %v2217 = vunpack.c.h.b16 %v2061
    %v2218 = vunpack.c.l.b16 %v2062
    %v2219 = vunpack.c.h.b16 %v2062
    %v2220 = vunpack.c.l.b16 %v2063
    %v2221 = vunpack.c.h.b16 %v2063
    %v2222 = vunpack.c.l.b16 %v2064
    %v2223 = vunpack.c.h.b16 %v2064
    %v2224 = vunpack.c.l.b16 %v2065
    %v2225 = vunpack.c.h.b16 %v2065
    %v2226 = vunpack.c.l.b16 %v2066
    %v2227 = vunpack.c.h.b16 %v2066
    %v2228 = vunpack.c.l.b16 %v2067
    %v2229 = vunpack.c.h.b16 %v2067
    %v2230 = vunpack.c.l.b16 %v2068
    %v2231 = vunpack.c.h.b16 %v2068
    %v2232 = vunpack.c.l.b16 %v2069
    %v2233 = vunpack.c.h.b16 %v2069
    %v2234 = vunpack.c.l.b16 %v2070
    %v2235 = vunpack.c.h.b16 %v2070
    %v2236 = vunpack.c.l.b16 %v2071
    %v2237 = vunpack.c.h.b16 %v2071
    %v2238 = vunpack.c.l.b16 %v2072
    %v2239 = vunpack.c.h.b16 %v2072
    %v2240 = vunpack.c.l.b16 %v2073
    %v2241 = vunpack.c.h.b16 %v2073
    %v2242 = vunpack.c.l.b16 %v2074
    %v2243 = vunpack.c.h.b16 %v2074
    %v2244 = vunpack.c.l.b16 %v2075
    %v2245 = vunpack.c.h.b16 %v2075
    %v2246 = vunpack.c.l.b16 %v2076
    %v2247 = vunpack.c.h.b16 %v2076
    %v2248 = vunpack.c.l.b16 %v2077
    %v2249 = vunpack.c.h.b16 %v2077
    %v2250 = vunpack.c.l.b16 %v2078
    %v2251 = vunpack.c.h.b16 %v2078
    %v2252 = vunpack.c.l.b16 %v2079
    %v2253 = vunpack.c.h.b16 %v2079
    %v2254 = vunpack.c.l.b16 %v2080
    %v2255 = vunpack.c.h.b16 %v2080
    %v2256 = vunpack.c.l.b16 %v2081
    %v2257 = vunpack.c.h.b16 %v2081
    %v2258 = vunpack.c.l.b16 %v2082
    %v2259 = vunpack.c.h.b16 %v2082
    %v2260 = vunpack.c.l.b16 %v2083
    %v2261 = vunpack.c.h.b16 %v2083
    %v2262 = vunpack.c.l.b16 %v2084
    %v2263 = vunpack.c.h.b16 %v2084
    %v2264 = vunpack.c.l.b16 %v2085
    %v2265 = vunpack.c.h.b16 %v2085
    %v2266 = vunpack.c.l.b16 %v2086
    %v2267 = vunpack.c.h.b16 %v2086
    %v2268 = vunpack.c.l.b16 %v2087
    %v2269 = vunpack.c.h.b16 %v2087
    %v2270 = vunpack.c.l.b16 %v2088
    %v2271 = vunpack.c.h.b16 %v2088
    %v2272 = vunpack.c.l.b16 %v2089
    %v2273 = vunpack.c.h.b16 %v2089
    %v2274 = vunpack.c.l.b16 %v2090
    %v2275 = vunpack.c.h.b16 %v2090
    %v2276 = vunpack.c.l.b16 %v2091
    %v2277 = vunpack.c.h.b16 %v2091
    %v2278 = vunpack.c.l.b16 %v2092
    %v2279 = vunpack.c.h.b16 %v2092
    %v2280 = vunpack.c.l.b16 %v2093
    %v2281 = vunpack.c.h.b16 %v2093
    %v2282 = vunpack.c.l.b16 %v2094
    %v2283 = vunpack.c.h.b16 %v2094
    %v2284 = vunpack.c.l.b16 %v2095
    %v2285 = vunpack.c.h.b16 %v2095
    %v2286 = vunpack.c.l.b16 %v2096
    %v2287 = vunpack.c.h.b16 %v2096
    %v2288 = vunpack.c.l.b16 %v2097
    %v2289 = vunpack.c.h.b16 %v2097
    %v2290 = vunpack.c.l.b16 %v2098
    %v2291 = vunpack.c.h.b16 %v2098
    %v2292 = vunpack.c.l.b16 %v2099
    %v2293 = vunpack.c.h.b16 %v2099
    %v2294 = vunpack.c.l.b16 %v2100
    %v2295 = vunpack.c.h.b16 %v2100
    %v2296 = vunpack.c.l.b16 %v2101
    %v2297 = vunpack.c.h.b16 %v2101
    %v2298 = vunpack.c.l.b16 %v2102
    %v2299 = vunpack.c.h.b16 %v2102
    %v2300 = vunpack.c.l.b16 %v2103
    %v2301 = vunpack.c.h.b16 %v2103
    %v2302 = vunpack.c.l.b16 %v2104
    %v2303 = vunpack.c.h.b16 %v2104
    %v2304 = vunpack.c.l.b16 %v2105
    %v2305 = vunpack.c.h.b16 %v2105
    %v2306 = vunpack.c.l.b16 %v2106
    %v2307 = vunpack.c.h.b16 %v2106
    %v2308 = vunpack.c.l.b16 %v2107
    %v2309 = vunpack.c.h.b16 %v2107
    %v2310 = vunpack.c.l.b16 %v2108
    %v2311 = vunpack.c.h.b16 %v2108
    %v2312 = vunpack.c.l.b16 %v2109
    %v2313 = vunpack.c.h.b16 %v2109
    %v2314 = vpack.c.b16 %v2188, %v2186
    %v2315 = vpack.c.b16 %v2189, %v2187
    %v2316 = vpack.c.b16 %v2192, %v2190
    %v2317 = vpack.c.b16 %v2193, %v2191
    %v2318 = vpack.c.b16 %v2196, %v2194
    %v2319 = vpack.c.b16 %v2197, %v2195
    %v2320 = vpack.c.b16 %v2200, %v2198
    %v2321 = vpack.c.b16 %v2201, %v2199
    %v2322 = vpack.c.b16 %v2204, %v2202
    %v2323 = vpack.c.b16 %v2205, %v2203
    %v2324 = vpack.c.b16 %v2208, %v2206
    %v2325 = vpack.c.b16 %v2209, %v2207
    %v2326 = vpack.c.b16 %v2212, %v2210
    %v2327 = vpack.c.b16 %v2213, %v2211
    %v2328 = vpack.c.b16 %v2216, %v2214
    %v2329 = vpack.c.b16 %v2217, %v2215
    %v2330 = vpack.c.b16 %v2220, %v2218
    %v2331 = vpack.c.b16 %v2221, %v2219
    %v2332 = vpack.c.b16 %v2224, %v2222
    %v2333 = vpack.c.b16 %v2225, %v2223
    %v2334 = vpack.c.b16 %v2228, %v2226
    %v2335 = vpack.c.b16 %v2229, %v2227
    %v2336 = vpack.c.b16 %v2232, %v2230
    %v2337 = vpack.c.b16 %v2233, %v2231
    %v2338 = vpack.c.b16 %v2236, %v2234
    %v2339 = vpack.c.b16 %v2237, %v2235
    %v2340 = vpack.c.b16 %v2240, %v2238
    %v2341 = vpack.c.b16 %v2241, %v2239
    %v2342 = vpack.c.b16 %v2244, %v2242
    %v2343 = vpack.c.b16 %v2245, %v2243
    %v2344 = vpack.c.b16 %v2248, %v2246
    %v2345 = vpack.c.b16 %v2249, %v2247
    %v2346 = vpack.c.b16 %v2252, %v2250
    %v2347 = vpack.c.b16 %v2253, %v2251
    %v2348 = vpack.c.b16 %v2256, %v2254
    %v2349 = vpack.c.b16 %v2257, %v2255
    %v2350 = vpack.c.b16 %v2260, %v2258
    %v2351 = vpack.c.b16 %v2261, %v2259
    %v2352 = vpack.c.b16 %v2264, %v2262
    %v2353 = vpack.c.b16 %v2265, %v2263
    %v2354 = vpack.c.b16 %v2268, %v2266
    %v2355 = vpack.c.b16 %v2269, %v2267
    %v2356 = vpack.c.b16 %v2272, %v2270
    %v2357 = vpack.c.b16 %v2273, %v2271
    %v2358 = vpack.c.b16 %v2276, %v2274
    %v2359 = vpack.c.b16 %v2277, %v2275
    %v2360 = vpack.c.b16 %v2280, %v2278
    %v2361 = vpack.c.b16 %v2281, %v2279
    %v2362 = vpack.c.b16 %v2284, %v2282
    %v2363 = vpack.c.b16 %v2285, %v2283
    %v2364 = vpack.c.b16 %v2288, %v2286
    %v2365 = vpack.c.b16 %v2289, %v2287
    %v2366 = vpack.c.b16 %v2292, %v2290
    %v2367 = vpack.c.b16 %v2293, %v2291
    %v2368 = vpack.c.b16 %v2296, %v2294
    %v2369 = vpack.c.b16 %v2297, %v2295
    %v2370 = vpack.c.b16 %v2300, %v2298
    %v2371 = vpack.c.b16 %v2301, %v2299
    %v2372 = vpack.c.b16 %v2304, %v2302
    %v2373 = vpack.c.b16 %v2305, %v2303
    %v2374 = vpack.c.b16 %v2308, %v2306
    %v2375 = vpack.c.b16 %v2309, %v2307
    %v2376 = vpack.c.b16 %v2312, %v2310
    %v2377 = vpack.c.b16 %v2313, %v2311
    %2442 = vmatprep.subr.bf16.mxu0 %v2315
    %2443 = vmatpush1.bf16.msra.mxu0 %v2314
    %2444 = vmatprep.subr.bf16.mxu0 %v2317
    %2445 = vmatpush1.bf16.msra.mxu0 %v2316
    %2446 = vmatprep.subr.bf16.mxu0 %v2319
    %2447 = vmatpush1.bf16.msra.mxu0 %v2318
    %2448 = vmatprep.subr.bf16.mxu0 %v2321
    %2449 = vmatpush1.bf16.msra.mxu0 %v2320
    %2450 = vmatprep.subr.bf16.mxu0 %v2323
    %2451 = vmatpush1.bf16.msra.mxu0 %v2322
    %2452 = vmatprep.subr.bf16.mxu0 %v2325
    %2453 = vmatpush1.bf16.msra.mxu0 %v2324
    %2454 = vmatprep.subr.bf16.mxu0 %v2327
    %2455 = vmatpush1.bf16.msra.mxu0 %v2326
    %2456 = vmatprep.subr.bf16.mxu0 %v2329
    %2457 = vmatpush1.bf16.msra.mxu0 %v2328
    %2458 = vmatprep.subr.bf16.mxu0 %v2331
    %2459 = vmatpush1.bf16.msra.mxu0 %v2330
    %2460 = vmatprep.subr.bf16.mxu0 %v2333
    %2461 = vmatpush1.bf16.msra.mxu0 %v2332
    %2462 = vmatprep.subr.bf16.mxu0 %v2335
    %2463 = vmatpush1.bf16.msra.mxu0 %v2334
    %2464 = vmatprep.subr.bf16.mxu0 %v2337
    %2465 = vmatpush1.bf16.msra.mxu0 %v2336
    %2466 = vmatprep.subr.bf16.mxu0 %v2339
    %2467 = vmatpush1.bf16.msra.mxu0 %v2338
    %2468 = vmatprep.subr.bf16.mxu0 %v2341
    %2469 = vmatpush1.bf16.msra.mxu0 %v2340
    %2470 = vmatprep.subr.bf16.mxu0 %v2343
    %2471 = vmatpush1.bf16.msra.mxu0 %v2342
    %2472 = vmatprep.subr.bf16.mxu0 %v2345
    %2473 = vmatpush1.bf16.msra.mxu0 %v2344
    %2474 = vmatprep.mubr.bf16.mxu0 %v2043
    %2475 = vmatmul.mubr.bf16.gmra.mrb[0].mxu0 %v2042
    %v2476 = vpop.f32.mrb[0].mxu0
    %v2477 = vadd.f32 %v2115, %v2476
    %v2478 = vpop.f32.mrb[0].mxu0
    %v2479 = vadd.f32 %v2119, %v2478
    %v2480 = vpop.f32.mrb[0].mxu0
    %v2481 = vadd.f32 %v2115, %v2480
    %v2482 = vpop.f32.mrb[0].mxu0
    %v2483 = vadd.f32 %v2119, %v2482
    %2484 = vdwg.mxu0
    %2485 = vmatprep.subr.bf16.mxu0 %v2347
    %2486 = vmatpush1.bf16.msra.mxu0 %v2346
    %2487 = vmatprep.subr.bf16.mxu0 %v2349
    %2488 = vmatpush1.bf16.msra.mxu0 %v2348
    %2489 = vmatprep.subr.bf16.mxu0 %v2351
    %2490 = vmatpush1.bf16.msra.mxu0 %v2350
    %2491 = vmatprep.subr.bf16.mxu0 %v2353
    %2492 = vmatpush1.bf16.msra.mxu0 %v2352
    %2493 = vmatprep.subr.bf16.mxu0 %v2355
    %2494 = vmatpush1.bf16.msra.mxu0 %v2354
    %2495 = vmatprep.subr.bf16.mxu0 %v2357
    %2496 = vmatpush1.bf16.msra.mxu0 %v2356
    %2497 = vmatprep.subr.bf16.mxu0 %v2359
    %2498 = vmatpush1.bf16.msra.mxu0 %v2358
    %2499 = vmatprep.subr.bf16.mxu0 %v2361
    %2500 = vmatpush1.bf16.msra.mxu0 %v2360
    %2501 = vmatprep.subr.bf16.mxu0 %v2363
    %2502 = vmatpush1.bf16.msra.mxu0 %v2362
    %2503 = vmatprep.subr.bf16.mxu0 %v2365
    %2504 = vmatpush1.bf16.msra.mxu0 %v2364
    %2505 = vmatprep.subr.bf16.mxu0 %v2367
    %2506 = vmatpush1.bf16.msra.mxu0 %v2366
    %2507 = vmatprep.subr.bf16.mxu0 %v2369
    %2508 = vmatpush1.bf16.msra.mxu0 %v2368
    %2509 = vmatprep.subr.bf16.mxu0 %v2371
    %2510 = vmatpush1.bf16.msra.mxu0 %v2370
    %2511 = vmatprep.subr.bf16.mxu0 %v2373
    %2512 = vmatpush1.bf16.msra.mxu0 %v2372
    %2513 = vmatprep.subr.bf16.mxu0 %v2375
    %2514 = vmatpush1.bf16.msra.mxu0 %v2374
    %2515 = vmatprep.subr.bf16.mxu0 %v2377
    %2516 = vmatpush1.bf16.msra.mxu0 %v2376
    %2517 = vmatprep.mubr.bf16.mxu0 %v2045
    %2518 = vmatmul.mubr.bf16.gmra.mrb[0].mxu0 %v2044
    %v2519 = vpop.f32.mrb[0].mxu0
    %v2520 = vadd.f32 %v2477, %v2519
    %v2521 = vpop.f32.mrb[0].mxu0
    %v2522 = vadd.f32 %v2479, %v2521
    %v2523 = vpop.f32.mrb[0].mxu0
    %v2524 = vadd.f32 %v2481, %v2523
    %v2525 = vpop.f32.mrb[0].mxu0
    %v2526 = vadd.f32 %v2483, %v2525
    %2527 = vdwg.mxu0
    %v2528 = vpack.c.bf16 %v2524, %v2520
    %v2529 = vpack.c.bf16 %v2526, %v2522
    %v2530 = vmax.bf16 %v2528, 0
    %v2531 = vmax.bf16 %v2529, 0
    %v2532 = vmin.bf16 %v2530, 1065369472
    %v2533 = vmin.bf16 %v2531, 1065369472
    %v2534 = vld [vmem:[#allocation8] sm:$0xf]
    %v2535 = vld [vmem:[#allocation8 + $0x4] sm:$0xf]
    %v2536 = vld [vmem:[#allocation8 + $0x8] sm:$0xf]
    %v2537 = vld [vmem:[#allocation8 + $0xc] sm:$0xf]
    %v2538 = vld [vmem:[#allocation8 + $0x10] sm:$0xf]
    %v2539 = vld [vmem:[#allocation8 + $0x14] sm:$0xf]
    %v2540 = vld [vmem:[#allocation8 + $0x18] sm:$0xf]
    %v2541 = vld [vmem:[#allocation8 + $0x1c] sm:$0xf]
    %v2542 = vld [vmem:[#allocation8 + $0x20] sm:$0xf]
    %v2543 = vld [vmem:[#allocation8 + $0x24] sm:$0xf]
    %v2544 = vld [vmem:[#allocation8 + $0x28] sm:$0xf]
    %v2545 = vld [vmem:[#allocation8 + $0x2c] sm:$0xf]
    %v2546 = vld [vmem:[#allocation8 + $0x30] sm:$0xf]
    %v2547 = vld [vmem:[#allocation8 + $0x34] sm:$0xf]
    %v2548 = vld [vmem:[#allocation8 + $0x38] sm:$0xf]
    %v2549 = vld [vmem:[#allocation8 + $0x3c] sm:$0xf]
    %v2550 = vld [vmem:[#allocation8 + $0x40] sm:$0xf]
    %v2551 = vld [vmem:[#allocation8 + $0x44] sm:$0xf]
    %v2552 = vld [vmem:[#allocation8 + $0x48] sm:$0xf]
    %v2553 = vld [vmem:[#allocation8 + $0x4c] sm:$0xf]
    %v2554 = vld [vmem:[#allocation8 + $0x50] sm:$0xf]
    %v2555 = vld [vmem:[#allocation8 + $0x54] sm:$0xf]
    %v2556 = vld [vmem:[#allocation8 + $0x58] sm:$0xf]
    %v2557 = vld [vmem:[#allocation8 + $0x5c] sm:$0xf]
    %v2558 = vld [vmem:[#allocation8 + $0x60] sm:$0xf]
    %v2559 = vld [vmem:[#allocation8 + $0x64] sm:$0xf]
    %v2560 = vld [vmem:[#allocation8 + $0x68] sm:$0xf]
    %v2561 = vld [vmem:[#allocation8 + $0x6c] sm:$0xf]
    %v2562 = vld [vmem:[#allocation8 + $0x70] sm:$0xf]
    %v2563 = vld [vmem:[#allocation8 + $0x74] sm:$0xf]
    %v2564 = vld [vmem:[#allocation8 + $0x78] sm:$0xf]
    %v2565 = vld [vmem:[#allocation8 + $0x7c] sm:$0xf]
    %v2566 = vld [vmem:[%s6] sm:$0x1]
    %v2568 = vlaneseq
    %v2569 = vshrl.u32 %v2568, 7
    %v2570 = vsub.s32 0, %v2569
    %v2571 = vrot.slane %v2566, %v2570
    %v2605 = vunpack.c.l.b16 %v2534
    %v2606 = vunpack.c.l.b16 %v2535
    %v2607 = vunpack.c.l.b16 %v2536
    %v2608 = vunpack.c.l.b16 %v2537
    %v2609 = vunpack.c.l.b16 %v2538
    %v2610 = vunpack.c.l.b16 %v2539
    %v2611 = vunpack.c.l.b16 %v2540
    %v2612 = vunpack.c.l.b16 %v2541
    %v2613 = vunpack.c.l.b16 %v2542
    %v2614 = vunpack.c.l.b16 %v2543
    %v2615 = vunpack.c.l.b16 %v2544
    %v2616 = vunpack.c.l.b16 %v2545
    %v2617 = vunpack.c.l.b16 %v2546
    %v2618 = vunpack.c.l.b16 %v2547
    %v2619 = vunpack.c.l.b16 %v2548
    %v2620 = vunpack.c.l.b16 %v2549
    %v2621 = vunpack.c.l.b16 %v2550
    %v2622 = vunpack.c.l.b16 %v2551
    %v2623 = vunpack.c.l.b16 %v2552
    %v2624 = vunpack.c.l.b16 %v2553
    %v2625 = vunpack.c.l.b16 %v2554
    %v2626 = vunpack.c.l.b16 %v2555
    %v2627 = vunpack.c.l.b16 %v2556
    %v2628 = vunpack.c.l.b16 %v2557
    %v2629 = vunpack.c.l.b16 %v2558
    %v2630 = vunpack.c.l.b16 %v2559
    %v2631 = vunpack.c.l.b16 %v2560
    %v2632 = vunpack.c.l.b16 %v2561
    %v2633 = vunpack.c.l.b16 %v2562
    %v2634 = vunpack.c.l.b16 %v2563
    %v2635 = vunpack.c.l.b16 %v2564
    %v2636 = vunpack.c.l.b16 %v2565
    %v2637 = vpack.c.b16 %v2606, %v2605
    %v2638 = vpack.c.b16 %v2608, %v2607
    %v2639 = vpack.c.b16 %v2610, %v2609
    %v2640 = vpack.c.b16 %v2612, %v2611
    %v2641 = vpack.c.b16 %v2614, %v2613
    %v2642 = vpack.c.b16 %v2616, %v2615
    %v2643 = vpack.c.b16 %v2618, %v2617
    %v2644 = vpack.c.b16 %v2620, %v2619
    %v2645 = vpack.c.b16 %v2622, %v2621
    %v2646 = vpack.c.b16 %v2624, %v2623
    %v2647 = vpack.c.b16 %v2626, %v2625
    %v2648 = vpack.c.b16 %v2628, %v2627
    %v2649 = vpack.c.b16 %v2630, %v2629
    %v2650 = vpack.c.b16 %v2632, %v2631
    %v2651 = vpack.c.b16 %v2634, %v2633
    %v2652 = vpack.c.b16 %v2636, %v2635
    %2669 = vmatprep.subr.bf16.mxu0 0
    %2670 = vmatpush1.bf16.msra.mxu0 %v2637
    %2671 = vmatprep.subr.bf16.mxu0 0
    %2672 = vmatpush1.bf16.msra.mxu0 %v2638
    %2673 = vmatprep.subr.bf16.mxu0 0
    %2674 = vmatpush1.bf16.msra.mxu0 %v2639
    %2675 = vmatprep.subr.bf16.mxu0 0
    %2676 = vmatpush1.bf16.msra.mxu0 %v2640
    %2677 = vmatprep.subr.bf16.mxu0 0
    %2678 = vmatpush1.bf16.msra.mxu0 %v2641
    %2679 = vmatprep.subr.bf16.mxu0 0
    %2680 = vmatpush1.bf16.msra.mxu0 %v2642
    %2681 = vmatprep.subr.bf16.mxu0 0
    %2682 = vmatpush1.bf16.msra.mxu0 %v2643
    %2683 = vmatprep.subr.bf16.mxu0 0
    %2684 = vmatpush1.bf16.msra.mxu0 %v2644
    %2685 = vmatprep.subr.bf16.mxu0 0
    %2686 = vmatpush1.bf16.msra.mxu0 %v2645
    %2687 = vmatprep.subr.bf16.mxu0 0
    %2688 = vmatpush1.bf16.msra.mxu0 %v2646
    %2689 = vmatprep.subr.bf16.mxu0 0
    %2690 = vmatpush1.bf16.msra.mxu0 %v2647
    %2691 = vmatprep.subr.bf16.mxu0 0
    %2692 = vmatpush1.bf16.msra.mxu0 %v2648
    %2693 = vmatprep.subr.bf16.mxu0 0
    %2694 = vmatpush1.bf16.msra.mxu0 %v2649
    %2695 = vmatprep.subr.bf16.mxu0 0
    %2696 = vmatpush1.bf16.msra.mxu0 %v2650
    %2697 = vmatprep.subr.bf16.mxu0 0
    %2698 = vmatpush1.bf16.msra.mxu0 %v2651
    %2699 = vmatprep.subr.bf16.mxu0 0
    %2700 = vmatpush1.bf16.msra.mxu0 %v2652
    %2701 = vmatprep.mubr.bf16.mxu0 %v2533
    %2702 = vmatmul.mubr.bf16.gmra.mrb[0].mxu0 %v2532
    %v2703 = vpop.f32.mrb[0].mxu0
    %v2704 = vadd.f32 %v2571, %v2703
    %v2705 = vpop.f32.mrb[0].mxu0
    %v2706 = vpop.f32.mrb[0].mxu0
    %v2707 = vadd.f32 %v2571, %v2706
    %v2708 = vpop.f32.mrb[0].mxu0
    %2709 = vdwg.mxu0
    %2710 = vmax.xlane.f32.xlu0 %v2704
    %v2711 = vpop.xlane.xlu0 %2710
    %2712 = vmax.xlane.f32.xlu0 %v2707
    %v2713 = vpop.xlane.xlu0 %2712
    %v2714 = vsub.f32 %v2704, %v2711
    %v2715 = vsub.f32 %v2707, %v2713
    %v2716 = vmul.f32 %v2714, 1.442695
    %v2717 = vpow.pop %v2716
    %v2718 = vmul.f32 %v2715, 1.442695
    %v2719 = vpow.pop %v2718
    %2720 = vadd.xlane.f32.xlu0 %v2717
    %v2721 = vpop.xlane.xlu0 %2720
    %2722 = vadd.xlane.f32.xlu0 %v2719
    %v2723 = vpop.xlane.xlu0 %2722
    %v2724 = vlog2.pop %v2721
    %v2725 = vmul.f32 %v2724, 0.6931472
    %v2726 = vlog2.pop %v2723
    %v2727 = vmul.f32 %v2726, 0.6931472
    %v2728 = vsub.f32 %v2714, %v2725
    %v2729 = vsub.f32 %v2715, %v2727
    %2730 = vst [vmem:[#allocation10] sm:$0xff] %v2728
    %2731 = vst [vmem:[#allocation10 + $0x8] sm:$0xff] %v2729
    // Predicated region
    $region46: #{tpu_custom_call.1} parent=1 // pred_check
      _
    $region47: #{tpu_custom_call.1} parent=1 // pred_check_branch
      %2733 = sbr.rel (0) target = $region49
    $region48: #{tpu_custom_call.1} parent=1 // pred_region
      %s2735 = ssub.s32 256, 256
      %2736 = vsyncadd [#allocation4], %s2735
      %s2737 = sshll.u32 [#allocation10], 4
      %s2738 = int_to_ptr.vmem [resolvable:$true] %s2737
      %2743 = dma.vmem_to_hbm [thread:$0]  %s2738, 256, %s7, [#allocation4], 128, 128, 8
    $region49: #{tpu_custom_call.1} parent=1 // pred_fallthru
      _
    // Predicated region
    $region50: #{tpu_custom_call.1} parent=1 // pred_check
      _
    $region51: #{tpu_custom_call.1} parent=1 // pred_check_branch
      %2745 = sbr.rel (0) target = $region53
    $region52: #{tpu_custom_call.1} parent=1 // pred_region
      %2746 = dma.done [#allocation4], 256
    $region53: #{tpu_custom_call.1} parent=1 // pred_fallthru
      _
    %2747 = vsyncpa [#allocation3], 1
    %2748 = vsyncpa [#allocation6], 1
    %2749 = vsyncpa [#allocation9], 1
    %2750 = vsyncpa [#allocation4], 1

</llo_original>
